<compile_context>
chip_gen: v6e
topology: v6e:2x2x1
jax: 0.10.0
libtpu: 0.0.40
codegen_flags: <defaults>
</compile_context>

<pallas_src>
import functools

import numpy as np
import jax
import jax.numpy as jnp
from jax import lax
from jax.experimental import pallas as pl
from jax.experimental.pallas import tpu as pltpu

MIN_BIN_WIDTH = 1e-3
MIN_BIN_HEIGHT = 1e-3
MIN_DERIVATIVE = 1e-3

_HI = lax.Precision.HIGHEST   # keep the 0/1 selection matmuls exact in f32


def _nsf_fwd_kernel(u_ref, sel_ref, scat_ref, rep_ref, edges_ref, tab_ref,
                    x_ref, logd_ref, *, bound, dim):
    """One (TB, n_feat) batch tile: column-select -> RQS spline -> scatter back."""
    u = u_ref[...]                                          # (TB, F)

    # --- gather the spline columns with one MXU matmul (exact 0/1 selector) ---
    xsel = jnp.dot(u, sel_ref[...], precision=_HI,
                   preferred_element_type=jnp.float32)      # (TB, dim)
    inside = (xsel >= -bound) & (xsel <= bound)             # linear tails outside
    xc = jnp.clip(xsel, -bound, bound)

    # --- bin search: replicate each column across its `knots` lanes (MXU) and
    #     compare once against the packed [lo, hi) edge table ------------------
    xrep = jnp.dot(xc, rep_ref[...], precision=_HI,
                   preferred_element_type=jnp.float32)      # (TB, dim*knots)
    lo = edges_ref[0:1, :]
    hi = edges_ref[1:2, :]
    onehot = ((xrep >= lo) & (xrep < hi)).astype(jnp.float32)

    # --- gather all 7 per-bin parameters for all columns in one MXU matmul ----
    g = jnp.dot(onehot, tab_ref[...], precision=_HI,
                preferred_element_type=jnp.float32)         # (TB, 7*dim)
    icw = g[:, 0 * dim:1 * dim]    # bin left x
    iwi = g[:, 1 * dim:2 * dim]    # 1 / bin width (precomputed reciprocal)
    ich = g[:, 2 * dim:3 * dim]    # bin left y
    ih = g[:, 3 * dim:4 * dim]     # bin height
    idl = g[:, 4 * dim:5 * dim]    # delta = height / width
    ide = g[:, 5 * dim:6 * dim]    # derivative at left knot
    idp = g[:, 6 * dim:7 * dim]    # derivative at right knot

    # --- rational-quadratic spline, vectorized over (TB, dim) -----------------
    theta = (xc - icw) * iwi
    omt = 1.0 - theta
    tom = theta * omt
    num = ih * (idl * theta * theta + ide * tom)
    den = idl + (ide + idp - 2.0 * idl) * tom
    rden = 1.0 / den                                        # exact: log-det accuracy
    y_sp = ich + num * rden
    dnum = idl * idl * (idp * theta * theta + 2.0 * idl * tom + ide * omt * omt)
    lad = jnp.log(dnum * rden * rden)                       # single EUP log

    ysel = jnp.where(inside, y_sp, xsel)
    lad = jnp.where(inside, lad, 0.0)

    # --- scatter back: x = u + (ysel - xsel) placed into the node columns -----
    x_ref[...] = u + jnp.dot(ysel - xsel, scat_ref[...], precision=_HI,
                             preferred_element_type=jnp.float32)
    logd_ref[...] = jnp.sum(lad, axis=-1, keepdims=True)


def _normalize_params(w, h, d, bound):
    """Raw logits -> knot positions / widths / heights / derivatives (tiny glue)."""
    dim, knots = w.shape

    widths = jax.nn.softmax(w, axis=-1)
    widths = MIN_BIN_WIDTH + (1.0 - MIN_BIN_WIDTH * knots) * widths
    cumwidths = jnp.concatenate(
        [jnp.zeros((dim, 1), w.dtype), jnp.cumsum(widths, axis=-1)], axis=-1)
    cumwidths = (2.0 * bound) * cumwidths - bound
    cumwidths = cumwidths.at[:, 0].set(-bound)
    cumwidths = cumwidths.at[:, -1].set(bound)
    widths = cumwidths[:, 1:] - cumwidths[:, :-1]

    heights = jax.nn.softmax(h, axis=-1)
    heights = MIN_BIN_HEIGHT + (1.0 - MIN_BIN_HEIGHT * knots) * heights
    cumheights = jnp.concatenate(
        [jnp.zeros((dim, 1), h.dtype), jnp.cumsum(heights, axis=-1)], axis=-1)
    cumheights = (2.0 * bound) * cumheights - bound
    cumheights = cumheights.at[:, 0].set(-bound)
    cumheights = cumheights.at[:, -1].set(bound)
    heights = cumheights[:, 1:] - cumheights[:, :-1]

    # linear tails: pad derivative logits so the boundary slope == 1
    const = float(np.log(np.expm1(1.0 - MIN_DERIVATIVE)))
    d_pad = jnp.concatenate(
        [jnp.full((dim, 1), const, d.dtype), d,
         jnp.full((dim, 1), const, d.dtype)], axis=-1)
    derivatives = MIN_DERIVATIVE + jax.nn.softplus(d_pad)   # (dim, knots+1)

    delta = heights / widths
    return cumwidths, cumheights, widths, heights, delta, derivatives


def _pack_tables(cumwidths, cumheights, widths, heights, delta, derivatives,
                 *, nodes, n_feat, bound):
    """Pack parameters into the selector / replicator / gather tables."""
    dim, knots = widths.shape
    dtype = widths.dtype

    # per-knot gather table, block-diagonal over columns: one
    # (TB, dim*knots) x (dim*knots, 7*dim) MXU matmul gathers all 7 params
    # for every column at once; column j of param p lands at lane p*dim + j.
    tabs = jnp.stack(
        [cumwidths[:, :-1],            # bin left x
         1.0 / widths,                 # reciprocal bin width
         cumheights[:, :-1],           # bin left y
         heights, delta,
         derivatives[:, :-1], derivatives[:, 1:]], axis=-1)  # (dim, knots, 7)
    eye = jnp.eye(dim, dtype=dtype)
    tab = (tabs[:, :, :, None] * eye[:, None, None, :]).reshape(dim * knots,
                                                                7 * dim)

    # [lo, hi) edges for the bin mask; outer edges widened so every clipped
    # value lands in exactly one bin regardless of rounding.
    lo = cumwidths[:, :-1].at[:, 0].set(-(bound + 1.0))
    hi = cumwidths[:, 1:].at[:, -1].set(bound + 1.0)
    edges = jnp.stack([lo.reshape(-1), hi.reshape(-1)], axis=0)  # (2, dim*knots)

    nodes_arr = jnp.asarray(nodes, jnp.int32)
    sel = jnp.zeros((n_feat, dim), dtype).at[nodes_arr, jnp.arange(dim)].set(1.0)
    rep = jnp.kron(eye, jnp.ones((1, knots), dtype))             # (dim, dim*knots)
    return sel, sel.T, rep, edges, tab


def _round_up(x, m):
    return ((x + m - 1) // m) * m


@functools.partial(jax.jit, static_argnames=("nodes", "bound", "tb_max"))
def causal_nsf_forward(u, w, h, d, *, nodes, bound, tb_max=512):
    """Equivalent of CausalNSFLayer.forward: x = u.clone(); x[:, nodes], logd = rqs(u[:, nodes])."""
    b, n_feat = u.shape
    dim, knots = w.shape
    dk = dim * knots

    sel, scat, rep, edges, tab = _pack_tables(
        *_normalize_params(w, h, d, bound),
        nodes=nodes, n_feat=n_feat, bound=bound)

    # Large batch tiles (per-grid-step overhead dominates tiny tiles), but keep
    # >=2 grid steps when there is enough work so the parallel batch axis can
    # split across both TensorCores on v7x.
    b8 = _round_up(b, 8)
    tb = min(tb_max, b8)
    if b8 // tb < 2 and b8 >= 16:
        tb = _round_up((b8 + 1) // 2, 8)
    bp = _round_up(b, tb)
    u_pad = jnp.pad(u, ((0, bp - b), (0, 0))) if bp > b else u

    kernel = functools.partial(_nsf_fwd_kernel, bound=float(bound), dim=dim)
    x, logd = pl.pallas_call(
        kernel,
        out_shape=(jax.ShapeDtypeStruct((bp, n_feat), jnp.float32),
                   jax.ShapeDtypeStruct((bp, 1), jnp.float32)),
        grid=(bp // tb,),
        in_specs=[
            pl.BlockSpec((tb, n_feat), lambda i: (i, 0)),     # u batch tile
            pl.BlockSpec((n_feat, dim), lambda i: (0, 0)),    # column selector
            pl.BlockSpec((dim, n_feat), lambda i: (0, 0)),    # column scatter
            pl.BlockSpec((dim, dk), lambda i: (0, 0)),        # lane replicator
            pl.BlockSpec((2, dk), lambda i: (0, 0)),          # [lo, hi) edges
            pl.BlockSpec((dk, 7 * dim), lambda i: (0, 0)),    # packed gather table
        ],
        out_specs=(pl.BlockSpec((tb, n_feat), lambda i: (i, 0)),
                   pl.BlockSpec((tb, 1), lambda i: (i, 0))),
        input_output_aliases={0: 0},   # x aliases (padded) u: no extra HBM pass
        compiler_params=pltpu.CompilerParams(
            dimension_semantics=("parallel",)),
    )(u_pad, sel, scat, rep, edges, tab)
    return x[:b], logd[:b, 0]


def _reference_forward(u, w, h, d, *, nodes, bound):
    """Pure-JAX reference of the same RQS formulation (correctness check)."""
    cw, ch, wd, hg, dl, der = _normalize_params(w, h, d, bound)
    nodes_arr = jnp.asarray(nodes, jnp.int32)
    xsel = u[:, nodes_arr]
    inside = (xsel >= -bound) & (xsel <= bound)
    xc = jnp.clip(xsel, -bound, bound)
    idx = jnp.sum((xc[:, :, None] >= cw[None, :, 1:-1]).astype(jnp.int32),
                  axis=-1)                                   # (B, dim) bin index
    jj = jnp.arange(cw.shape[0])[None, :]
    icw, ibw, ich = cw[jj, idx], wd[jj, idx], ch[jj, idx]
    ih, idl = hg[jj, idx], dl[jj, idx]
    ide, idp = der[jj, idx], der[jj, idx + 1]
    theta = (xc - icw) / ibw
    tom = theta * (1.0 - theta)
    num = ih * (idl * theta * theta + ide * tom)
    den = idl + (ide + idp - 2.0 * idl) * tom
    y_sp = ich + num / den
    dnum = idl * idl * (idp * theta * theta + 2.0 * idl * tom
                        + ide * (1.0 - theta) ** 2)
    lad = jnp.log(dnum) - 2.0 * jnp.log(den)
    ysel = jnp.where(inside, y_sp, xsel)
    logd = jnp.sum(jnp.where(inside, lad, 0.0), axis=-1)
    x = u.at[:, nodes_arr].set(ysel)
    return x, logd


if __name__ == "__main__":
    key = jax.random.PRNGKey(0)
    batch, n_feat = 8, 6
    nodes = (1, 3, 4)
    limits = jnp.array([1.5, 2.3, 0.7, 1.1, 0.9, 3.0], jnp.float32)

    # mirror CausalNSFLayer.__init__
    bins = int(2 * np.ceil(float(jnp.max(jnp.abs(limits[jnp.asarray(nodes)])))))
    knots = bins * 4
    dim = len(nodes)
    bound = bins / 2.0           # spline support [-bound, bound]; identity outside

    kw, kh, kd, ku = jax.random.split(key, 4)
    w = jax.random.uniform(kw, (dim, knots), minval=-0.5, maxval=0.5)
    h = jax.random.uniform(kh, (dim, knots), minval=-0.5, maxval=0.5)
    d = jax.random.uniform(kd, (dim, knots - 1), minval=-0.5, maxval=0.5)
    u = jax.random.normal(ku, (batch, n_feat), jnp.float32)

    x, logd = causal_nsf_forward(u, w, h, d, nodes=nodes, bound=bound)
    jax.block_until_ready((x, logd))

    assert x.shape == (batch, n_feat)
    assert logd.shape == (batch,)
    assert bool(jnp.all(jnp.isfinite(x))) and bool(jnp.all(jnp.isfinite(logd)))

    # untouched columns must pass through unchanged
    untouched = jnp.asarray([c for c in range(n_feat) if c not in nodes])
    assert bool(jnp.allclose(x[:, untouched], u[:, untouched]))

    # match a pure-JAX reference of the same spline formulation
    x_ref, logd_ref = _reference_forward(u, w, h, d, nodes=nodes, bound=bound)
    assert bool(jnp.allclose(x, x_ref, rtol=2e-2, atol=2e-2))
    assert bool(jnp.allclose(logd, logd_ref, rtol=2e-2, atol=2e-2))

    print("KERNEL_OK")
</pallas_src>

<mosaic_0001>
module attributes {stable_mosaic.version = 11 : i64} {
  func.func @_nsf_fwd_kernel(%arg0: i32, %arg1: memref<8x6xf32, #tpu.memory_space<vmem>>, %arg2: memref<6x3xf32, #tpu.memory_space<vmem>>, %arg3: memref<3x6xf32, #tpu.memory_space<vmem>>, %arg4: memref<3x72xf32, #tpu.memory_space<vmem>>, %arg5: memref<2x72xf32, #tpu.memory_space<vmem>>, %arg6: memref<72x21xf32, #tpu.memory_space<vmem>>, %arg7: memref<8x6xf32, #tpu.memory_space<vmem>>, %arg8: memref<8x1xf32, #tpu.memory_space<vmem>>) attributes {dimension_semantics = [#tpu.dimension_semantics<parallel>], iteration_bounds = array<i64: 1>, scalar_prefetch = 0 : i64, scratch_operands = 0 : i64, tpu.core_type = #tpu.core_type<tc>, window_params = [{transform_indices = @transform_0, window_bounds = array<i64: 8, 6>}, {pipeline_mode = #tpu.pipeline_mode<synchronous>, transform_indices = @transform_1, window_bounds = array<i64: 6, 3>}, {pipeline_mode = #tpu.pipeline_mode<synchronous>, transform_indices = @transform_2, window_bounds = array<i64: 3, 6>}, {pipeline_mode = #tpu.pipeline_mode<synchronous>, transform_indices = @transform_3, window_bounds = array<i64: 3, 72>}, {pipeline_mode = #tpu.pipeline_mode<synchronous>, transform_indices = @transform_4, window_bounds = array<i64: 2, 72>}, {pipeline_mode = #tpu.pipeline_mode<synchronous>, transform_indices = @transform_5, window_bounds = array<i64: 72, 21>}, {transform_indices = @transform_6, window_bounds = array<i64: 8, 6>}, {transform_indices = @transform_7, window_bounds = array<i64: 8, 1>}]} {
    %c0 = arith.constant 0 : index
    %c0_0 = arith.constant 0 : index
    %0 = vector.load %arg1[%c0, %c0_0] : memref<8x6xf32, #tpu.memory_space<vmem>>, vector<8x6xf32>
    %c0_1 = arith.constant 0 : index
    %c0_2 = arith.constant 0 : index
    %1 = vector.load %arg2[%c0_1, %c0_2] : memref<6x3xf32, #tpu.memory_space<vmem>>, vector<6x3xf32>
    %cst = arith.constant dense<0.000000e+00> : vector<8x3xf32>
    %2 = tpu.matmul %0, %1, %cst {dimension_numbers = #tpu.dot_dimension_numbers<[1], [0], [0], [1], [0, 0, 1, 1], [], []>, precision = #tpu.contract_precision<fp32>} : vector<8x6xf32>, vector<6x3xf32>, vector<8x3xf32> -> vector<8x3xf32>
    %cst_3 = arith.constant -3.000000e+00 : f32
    %3 = vector.broadcast %cst_3 : f32 to vector<8x3xf32>
    %4 = arith.cmpf oge, %2, %3 : vector<8x3xf32>
    %cst_4 = arith.constant 3.000000e+00 : f32
    %5 = vector.broadcast %cst_4 : f32 to vector<8x3xf32>
    %6 = arith.cmpf ole, %2, %5 : vector<8x3xf32>
    %7 = arith.andi %4, %6 : vector<8x3xi1>
    %cst_5 = arith.constant -3.000000e+00 : f32
    %cst_6 = arith.constant 3.000000e+00 : f32
    %8 = vector.broadcast %cst_5 : f32 to vector<8x3xf32>
    %9 = arith.maximumf %8, %2 : vector<8x3xf32>
    %10 = vector.broadcast %cst_6 : f32 to vector<8x3xf32>
    %11 = arith.minimumf %10, %9 : vector<8x3xf32>
    %c0_7 = arith.constant 0 : index
    %c0_8 = arith.constant 0 : index
    %12 = vector.load %arg4[%c0_7, %c0_8] : memref<3x72xf32, #tpu.memory_space<vmem>>, vector<3x72xf32>
    %cst_9 = arith.constant dense<0.000000e+00> : vector<8x72xf32>
    %13 = tpu.matmul %11, %12, %cst_9 {dimension_numbers = #tpu.dot_dimension_numbers<[1], [0], [0], [1], [0, 0, 1, 1], [], []>, precision = #tpu.contract_precision<fp32>} : vector<8x3xf32>, vector<3x72xf32>, vector<8x72xf32> -> vector<8x72xf32>
    %c0_10 = arith.constant 0 : index
    %c0_11 = arith.constant 0 : index
    %14 = vector.load %arg5[%c0_10, %c0_11] : memref<2x72xf32, #tpu.memory_space<vmem>>, vector<1x72xf32>
    %c1 = arith.constant 1 : index
    %c0_12 = arith.constant 0 : index
    %15 = vector.load %arg5[%c1, %c0_12] : memref<2x72xf32, #tpu.memory_space<vmem>>, vector<1x72xf32>
    %16 = vector.broadcast %14 : vector<1x72xf32> to vector<8x72xf32>
    %17 = arith.cmpf oge, %13, %16 : vector<8x72xf32>
    %18 = vector.broadcast %15 : vector<1x72xf32> to vector<8x72xf32>
    %19 = arith.cmpf olt, %13, %18 : vector<8x72xf32>
    %20 = arith.andi %17, %19 : vector<8x72xi1>
    %21 = arith.extui %20 : vector<8x72xi1> to vector<8x72xi32>
    %22 = arith.sitofp %21 : vector<8x72xi32> to vector<8x72xf32>
    %c0_13 = arith.constant 0 : index
    %c0_14 = arith.constant 0 : index
    %23 = vector.load %arg6[%c0_13, %c0_14] : memref<72x21xf32, #tpu.memory_space<vmem>>, vector<72x21xf32>
    %cst_15 = arith.constant dense<0.000000e+00> : vector<8x21xf32>
    %24 = tpu.matmul %22, %23, %cst_15 {dimension_numbers = #tpu.dot_dimension_numbers<[1], [0], [0], [1], [0, 0, 1, 1], [], []>, precision = #tpu.contract_precision<fp32>} : vector<8x72xf32>, vector<72x21xf32>, vector<8x21xf32> -> vector<8x21xf32>
    %25 = vector.extract_strided_slice %24 {offsets = [0, 0], sizes = [8, 3], strides = [1, 1]} : vector<8x21xf32> to vector<8x3xf32>
    %26 = vector.extract_strided_slice %24 {offsets = [0, 3], sizes = [8, 3], strides = [1, 1]} : vector<8x21xf32> to vector<8x3xf32>
    %27 = vector.extract_strided_slice %24 {offsets = [0, 6], sizes = [8, 3], strides = [1, 1]} : vector<8x21xf32> to vector<8x3xf32>
    %28 = vector.extract_strided_slice %24 {offsets = [0, 9], sizes = [8, 3], strides = [1, 1]} : vector<8x21xf32> to vector<8x3xf32>
    %29 = vector.extract_strided_slice %24 {offsets = [0, 12], sizes = [8, 3], strides = [1, 1]} : vector<8x21xf32> to vector<8x3xf32>
    %30 = vector.extract_strided_slice %24 {offsets = [0, 15], sizes = [8, 3], strides = [1, 1]} : vector<8x21xf32> to vector<8x3xf32>
    %31 = vector.extract_strided_slice %24 {offsets = [0, 18], sizes = [8, 3], strides = [1, 1]} : vector<8x21xf32> to vector<8x3xf32>
    %32 = arith.subf %11, %25 : vector<8x3xf32>
    %33 = arith.mulf %32, %26 : vector<8x3xf32>
    %cst_16 = arith.constant 1.000000e+00 : f32
    %34 = vector.broadcast %cst_16 : f32 to vector<8x3xf32>
    %35 = arith.subf %34, %33 : vector<8x3xf32>
    %36 = arith.mulf %33, %35 : vector<8x3xf32>
    %37 = arith.mulf %29, %33 : vector<8x3xf32>
    %38 = arith.mulf %37, %33 : vector<8x3xf32>
    %39 = arith.mulf %30, %36 : vector<8x3xf32>
    %40 = arith.addf %38, %39 : vector<8x3xf32>
    %41 = arith.mulf %28, %40 : vector<8x3xf32>
    %42 = arith.addf %30, %31 : vector<8x3xf32>
    %cst_17 = arith.constant 2.000000e+00 : f32
    %43 = vector.broadcast %cst_17 : f32 to vector<8x3xf32>
    %44 = arith.mulf %43, %29 : vector<8x3xf32>
    %45 = arith.subf %42, %44 : vector<8x3xf32>
    %46 = arith.mulf %45, %36 : vector<8x3xf32>
    %47 = arith.addf %29, %46 : vector<8x3xf32>
    %cst_18 = arith.constant 1.000000e+00 : f32
    %48 = vector.broadcast %cst_18 : f32 to vector<8x3xf32>
    %49 = arith.divf %48, %47 : vector<8x3xf32>
    %50 = arith.mulf %41, %49 : vector<8x3xf32>
    %51 = arith.addf %27, %50 : vector<8x3xf32>
    %52 = arith.mulf %29, %29 : vector<8x3xf32>
    %53 = arith.mulf %31, %33 : vector<8x3xf32>
    %54 = arith.mulf %53, %33 : vector<8x3xf32>
    %cst_19 = arith.constant 2.000000e+00 : f32
    %55 = vector.broadcast %cst_19 : f32 to vector<8x3xf32>
    %56 = arith.mulf %55, %29 : vector<8x3xf32>
    %57 = arith.mulf %56, %36 : vector<8x3xf32>
    %58 = arith.addf %54, %57 : vector<8x3xf32>
    %59 = arith.mulf %30, %35 : vector<8x3xf32>
    %60 = arith.mulf %59, %35 : vector<8x3xf32>
    %61 = arith.addf %58, %60 : vector<8x3xf32>
    %62 = arith.mulf %52, %61 : vector<8x3xf32>
    %63 = arith.mulf %62, %49 : vector<8x3xf32>
    %64 = arith.mulf %63, %49 : vector<8x3xf32>
    %65 = math.log %64 : vector<8x3xf32>
    %66 = arith.select %7, %51, %2 : vector<8x3xi1>, vector<8x3xf32>
    %cst_20 = arith.constant 0.000000e+00 : f32
    %67 = vector.broadcast %cst_20 : f32 to vector<8x3xf32>
    %68 = arith.select %7, %65, %67 : vector<8x3xi1>, vector<8x3xf32>
    %69 = arith.subf %66, %2 : vector<8x3xf32>
    %c0_21 = arith.constant 0 : index
    %c0_22 = arith.constant 0 : index
    %70 = vector.load %arg3[%c0_21, %c0_22] : memref<3x6xf32, #tpu.memory_space<vmem>>, vector<3x6xf32>
    %cst_23 = arith.constant dense<0.000000e+00> : vector<8x6xf32>
    %71 = tpu.matmul %69, %70, %cst_23 {dimension_numbers = #tpu.dot_dimension_numbers<[1], [0], [0], [1], [0, 0, 1, 1], [], []>, precision = #tpu.contract_precision<fp32>} : vector<8x3xf32>, vector<3x6xf32>, vector<8x6xf32> -> vector<8x6xf32>
    %72 = arith.addf %0, %71 : vector<8x6xf32>
    %c0_24 = arith.constant 0 : index
    %c0_25 = arith.constant 0 : index
    %73 = vector.load %arg7[%c0_24, %c0_25] : memref<8x6xf32, #tpu.memory_space<vmem>>, vector<8x6xf32>
    tpu.vector_store %arg7[%c0_24, %c0_25], %72 {strides = array<i32>} : memref<8x6xf32, #tpu.memory_space<vmem>>, vector<8x6xf32>,
    %cst_26 = arith.constant dense<0.000000e+00> : vector<8xf32>
    %74 = vector.multi_reduction <add>, %68, %cst_26 [1] : vector<8x3xf32> to vector<8xf32>
    %75 = vector.shape_cast %74 : vector<8xf32> to vector<8x1xf32>
    %c0_27 = arith.constant 0 : index
    %c0_28 = arith.constant 0 : index
    %76 = vector.load %arg8[%c0_27, %c0_28] : memref<8x1xf32, #tpu.memory_space<vmem>>, vector<8x1xf32>
    tpu.vector_store %arg8[%c0_27, %c0_28], %75 {strides = array<i32>} : memref<8x1xf32, #tpu.memory_space<vmem>>, vector<8x1xf32>,
    return
  }
  func.func @transform_0(%arg0: i32) -> (i32, i32) {
    %c0_i32 = arith.constant 0 : i32
    %c0_i32_0 = arith.constant 0 : i32
    return %arg0, %c0_i32 : i32, i32
  }
  func.func @transform_1(%arg0: i32) -> (i32, i32) {
    %c0_i32 = arith.constant 0 : i32
    %c0_i32_0 = arith.constant 0 : i32
    %c0_i32_1 = arith.constant 0 : i32
    return %c0_i32, %c0_i32_0 : i32, i32
  }
  func.func @transform_2(%arg0: i32) -> (i32, i32) {
    %c0_i32 = arith.constant 0 : i32
    %c0_i32_0 = arith.constant 0 : i32
    %c0_i32_1 = arith.constant 0 : i32
    return %c0_i32, %c0_i32_0 : i32, i32
  }
  func.func @transform_3(%arg0: i32) -> (i32, i32) {
    %c0_i32 = arith.constant 0 : i32
    %c0_i32_0 = arith.constant 0 : i32
    %c0_i32_1 = arith.constant 0 : i32
    return %c0_i32, %c0_i32_0 : i32, i32
  }
  func.func @transform_4(%arg0: i32) -> (i32, i32) {
    %c0_i32 = arith.constant 0 : i32
    %c0_i32_0 = arith.constant 0 : i32
    %c0_i32_1 = arith.constant 0 : i32
    return %c0_i32, %c0_i32_0 : i32, i32
  }
  func.func @transform_5(%arg0: i32) -> (i32, i32) {
    %c0_i32 = arith.constant 0 : i32
    %c0_i32_0 = arith.constant 0 : i32
    %c0_i32_1 = arith.constant 0 : i32
    return %c0_i32, %c0_i32_0 : i32, i32
  }
  func.func @transform_6(%arg0: i32) -> (i32, i32) {
    %c0_i32 = arith.constant 0 : i32
    %c0_i32_0 = arith.constant 0 : i32
    return %arg0, %c0_i32 : i32, i32
  }
  func.func @transform_7(%arg0: i32) -> (i32, i32) {
    %c0_i32 = arith.constant 0 : i32
    %c0_i32_0 = arith.constant 0 : i32
    return %arg0, %c0_i32 : i32, i32
  }
}

</mosaic_0001>

<llo_original>
// kernel: causal_nsf_forward.1
$region0: #{causal_nsf_forward.1}
  #allocation0 [shape = 'u32[]', space=smem, size = 0x4, offset = 0x4, fixed_abs, tag = 'smem constant byte address 0x4 - core index']
  #allocation1 [shape = 'u32[144,128]{1,0:T(1,128)}', space=vmem, size = 0x12000, scoped, tag = 'internal scratch']
  %s0 = inlined_call_operand.vmem [shape: f32[8,6], index: 0, kind: input, shape index: {}, may-alias: {0,6}]
  %s1 = inlined_call_operand.vmem [shape: f32[6,3], index: 1, kind: input, shape index: {}]
  %s2 = inlined_call_operand.vmem [shape: f32[3,6], index: 2, kind: input, shape index: {}]
  %s3 = inlined_call_operand.vmem [shape: f32[3,72], index: 3, kind: input, shape index: {}]
  %s4 = inlined_call_operand.vmem [shape: f32[2,72], index: 4, kind: input, shape index: {}]
  %s5 = inlined_call_operand.vmem [shape: f32[72,21], index: 5, kind: input, shape index: {}]
  %s6 = inlined_call_operand.vmem [shape: f32[8,6], index: 6, kind: output, shape index: {0}, may-alias: {0,6}]
  %s7 = inlined_call_operand.vmem [shape: f32[8,1], index: 7, kind: output, shape index: {1}]
  %8 = xla_tuple %s6, %s7
  %s9 = sld [smem:[#allocation0]]
  $region42: #{causal_nsf_forward.1} parent=0
    _
  %s11 = ssub.s32 1, %s9
  %s12 = scalar_select 0, %s11, %s9
  // Predicated region
  $region2: #{causal_nsf_forward.1} parent=0 // pred_check
    _
  $region3: #{causal_nsf_forward.1} parent=0 // pred_check_branch
    %14 = sbr.rel (0) target = $region5
  $region4: #{causal_nsf_forward.1} parent=0 // pred_region
    _
  $region5: #{causal_nsf_forward.1} parent=0 // pred_fallthru
    _
  // Predicated region
  $region6: #{causal_nsf_forward.1} parent=0 // pred_check
    _
  $region7: #{causal_nsf_forward.1} parent=0 // pred_check_branch
    %16 = sbr.rel (0) target = $region9
  $region8: #{causal_nsf_forward.1} parent=0 // pred_region
    _
  $region9: #{causal_nsf_forward.1} parent=0 // pred_fallthru
    _
  // Predicated region
  $region10: #{causal_nsf_forward.1} parent=0 // pred_check
    _
  $region11: #{causal_nsf_forward.1} parent=0 // pred_check_branch
    %18 = sbr.rel (0) target = $region13
  $region12: #{causal_nsf_forward.1} parent=0 // pred_region
    _
  $region13: #{causal_nsf_forward.1} parent=0 // pred_fallthru
    _
  // Predicated region
  $region14: #{causal_nsf_forward.1} parent=0 // pred_check
    _
  $region15: #{causal_nsf_forward.1} parent=0 // pred_check_branch
    %20 = sbr.rel (0) target = $region17
  $region16: #{causal_nsf_forward.1} parent=0 // pred_region
    _
  $region17: #{causal_nsf_forward.1} parent=0 // pred_fallthru
    _
  // Predicated region
  $region18: #{causal_nsf_forward.1} parent=0 // pred_check
    _
  $region19: #{causal_nsf_forward.1} parent=0 // pred_check_branch
    %22 = sbr.rel (0) target = $region21
  $region20: #{causal_nsf_forward.1} parent=0 // pred_region
    _
  $region21: #{causal_nsf_forward.1} parent=0 // pred_fallthru
    _
  // Predicated region
  $region22: #{causal_nsf_forward.1} parent=0 // pred_check
    _
  $region23: #{causal_nsf_forward.1} parent=0 // pred_check_branch
    %24 = sbr.rel (0) target = $region25
  $region24: #{causal_nsf_forward.1} parent=0 // pred_region
    _
  $region25: #{causal_nsf_forward.1} parent=0 // pred_fallthru
    _
  %v25 = vld [vmem:[%s0] sm:$0xff]
  %v26 = vld [vmem:[%s1] sm:$0x3f]
  %vm27 = vcmask 48128
  %v29 = vsel %vm27, %v25, 0
  %vm31 = vcmask 1045504
  %v33 = vsel %vm31, %v26, 0
  %35 = vmatprep.subr.mxu0 0.0
  %36 = vmatpush1.msra.mxu0 0.0
  %37 = vmatprep.subr.mxu0 0.0
  %38 = vmatpush1.msra.mxu0 0.0
  %39 = vmatprep.subr.mxu0 0.0
  %40 = vmatpush1.msra.mxu0 0.0
  %41 = vmatprep.subr.mxu0 0.0
  %42 = vmatpush1.msra.mxu0 0.0
  %43 = vmatprep.subr.mxu0 0.0
  %44 = vmatpush1.msra.mxu0 0.0
  %45 = vmatprep.subr.mxu0 0.0
  %46 = vmatpush1.msra.mxu0 0.0
  %47 = vmatprep.subr.mxu0 0.0
  %48 = vmatpush1.msra.mxu0 0.0
  %49 = vmatprep.subr.mxu0 0.0
  %50 = vmatpush1.msra.mxu0 0.0
  %51 = vmatprep.subr.mxu0 0.0
  %52 = vmatpush1.msra.mxu0 0.0
  %53 = vmatprep.subr.mxu0 0.0
  %54 = vmatpush1.msra.mxu0 0.0
  %55 = vmatprep.subr.mxu0 0.0
  %56 = vmatpush1.msra.mxu0 0.0
  %57 = vmatprep.subr.mxu0 0.0
  %58 = vmatpush1.msra.mxu0 0.0
  %59 = vmatprep.subr.mxu0 0.0
  %60 = vmatpush1.msra.mxu0 0.0
  %61 = vmatprep.subr.mxu0 0.0
  %62 = vmatpush1.msra.mxu0 0.0
  %63 = vmatprep.subr.mxu0 0.0
  %64 = vmatpush1.msra.mxu0 0.0
  %65 = vmatprep.subr.mxu0 0.0
  %v66 = vand.u32 %v33, 4294901760
  %67 = vmatpush1.msra.mxu0 %v66
  %68 = vmatprep.subr.mxu0 0.0
  %69 = vmatpush2.msra.mxu0 0.0
  %70 = vmatprep.subr.mxu0 0.0
  %71 = vmatpush2.msra.mxu0 0.0
  %72 = vmatprep.subr.mxu0 0.0
  %73 = vmatpush2.msra.mxu0 0.0
  %74 = vmatprep.subr.mxu0 0.0
  %75 = vmatpush2.msra.mxu0 0.0
  %76 = vmatprep.subr.mxu0 0.0
  %77 = vmatpush2.msra.mxu0 0.0
  %78 = vmatprep.subr.mxu0 0.0
  %79 = vmatpush2.msra.mxu0 0.0
  %80 = vmatprep.subr.mxu0 0.0
  %81 = vmatpush2.msra.mxu0 0.0
  %82 = vmatprep.subr.mxu0 0.0
  %83 = vmatpush2.msra.mxu0 0.0
  %84 = vmatprep.subr.mxu0 0.0
  %85 = vmatpush2.msra.mxu0 0.0
  %86 = vmatprep.subr.mxu0 0.0
  %87 = vmatpush2.msra.mxu0 0.0
  %88 = vmatprep.subr.mxu0 0.0
  %89 = vmatpush2.msra.mxu0 0.0
  %90 = vmatprep.subr.mxu0 0.0
  %91 = vmatpush2.msra.mxu0 0.0
  %92 = vmatprep.subr.mxu0 0.0
  %93 = vmatpush2.msra.mxu0 0.0
  %94 = vmatprep.subr.mxu0 0.0
  %95 = vmatpush2.msra.mxu0 0.0
  %96 = vmatprep.subr.mxu0 0.0
  %97 = vmatpush2.msra.mxu0 0.0
  %98 = vmatprep.subr.mxu0 0.0
  %99 = vmatpush2.msra.mxu0 0.0
  %100 = vmatprep.mubr.f32.mxu0 0.0
  %v101 = vand.u32 %v29, 4294901760
  %v102 = vsub.f32 %v29, %v101
  %v103 = vand.u32 %v102, 4294901760
  %v104 = vsub.f32 %v102, %v103
  %v105 = vand.u32 %v104, 4294901760
  %106 = vmatmul.mubr.f32.gmra.mxu0 %v105
  %v107 = vpop.f32.mrf.mxu0
  %v108 = vadd.f32 0.0, %v107
  %v109 = vpop.f32.mrf.mxu0
  %110 = vdwg.mxu0
  %111 = vmatprep.subr.mxu0 0.0
  %112 = vmatpush1.msra.mxu0 0.0
  %113 = vmatprep.subr.mxu0 0.0
  %114 = vmatpush1.msra.mxu0 0.0
  %115 = vmatprep.subr.mxu0 0.0
  %116 = vmatpush1.msra.mxu0 0.0
  %117 = vmatprep.subr.mxu0 0.0
  %118 = vmatpush1.msra.mxu0 0.0
  %119 = vmatprep.subr.mxu0 0.0
  %120 = vmatpush1.msra.mxu0 0.0
  %121 = vmatprep.subr.mxu0 0.0
  %122 = vmatpush1.msra.mxu0 0.0
  %123 = vmatprep.subr.mxu0 0.0
  %124 = vmatpush1.msra.mxu0 0.0
  %125 = vmatprep.subr.mxu0 0.0
  %126 = vmatpush1.msra.mxu0 0.0
  %127 = vmatprep.subr.mxu0 0.0
  %128 = vmatpush1.msra.mxu0 0.0
  %129 = vmatprep.subr.mxu0 0.0
  %130 = vmatpush1.msra.mxu0 0.0
  %131 = vmatprep.subr.mxu0 0.0
  %132 = vmatpush1.msra.mxu0 0.0
  %133 = vmatprep.subr.mxu0 0.0
  %134 = vmatpush1.msra.mxu0 0.0
  %135 = vmatprep.subr.mxu0 0.0
  %136 = vmatpush1.msra.mxu0 0.0
  %137 = vmatprep.subr.mxu0 0.0
  %138 = vmatpush1.msra.mxu0 0.0
  %139 = vmatprep.subr.mxu0 0.0
  %140 = vmatpush1.msra.mxu0 0.0
  %141 = vmatprep.subr.mxu0 0.0
  %v142 = vand.u32 %v33, 4294901760
  %v143 = vsub.f32 %v33, %v142
  %v144 = vand.u32 %v143, 4294901760
  %v145 = vsub.f32 %v143, %v144
  %v146 = vand.u32 %v145, 4294901760
  %147 = vmatpush1.msra.mxu0 %v146
  %148 = vmatprep.subr.mxu0 0.0
  %149 = vmatpush2.msra.mxu0 0.0
  %150 = vmatprep.subr.mxu0 0.0
  %151 = vmatpush2.msra.mxu0 0.0
  %152 = vmatprep.subr.mxu0 0.0
  %153 = vmatpush2.msra.mxu0 0.0
  %154 = vmatprep.subr.mxu0 0.0
  %155 = vmatpush2.msra.mxu0 0.0
  %156 = vmatprep.subr.mxu0 0.0
  %157 = vmatpush2.msra.mxu0 0.0
  %158 = vmatprep.subr.mxu0 0.0
  %159 = vmatpush2.msra.mxu0 0.0
  %160 = vmatprep.subr.mxu0 0.0
  %161 = vmatpush2.msra.mxu0 0.0
  %162 = vmatprep.subr.mxu0 0.0
  %163 = vmatpush2.msra.mxu0 0.0
  %164 = vmatprep.subr.mxu0 0.0
  %165 = vmatpush2.msra.mxu0 0.0
  %166 = vmatprep.subr.mxu0 0.0
  %167 = vmatpush2.msra.mxu0 0.0
  %168 = vmatprep.subr.mxu0 0.0
  %169 = vmatpush2.msra.mxu0 0.0
  %170 = vmatprep.subr.mxu0 0.0
  %171 = vmatpush2.msra.mxu0 0.0
  %172 = vmatprep.subr.mxu0 0.0
  %173 = vmatpush2.msra.mxu0 0.0
  %174 = vmatprep.subr.mxu0 0.0
  %175 = vmatpush2.msra.mxu0 0.0
  %176 = vmatprep.subr.mxu0 0.0
  %177 = vmatpush2.msra.mxu0 0.0
  %178 = vmatprep.subr.mxu0 0.0
  %179 = vmatpush2.msra.mxu0 0.0
  %180 = vmatprep.mubr.f32.mxu0 0.0
  %v181 = vand.u32 %v29, 4294901760
  %182 = vmatmul.mubr.f32.gmra.mxu0 %v181
  %v183 = vpop.f32.mrf.mxu0
  %v184 = vadd.f32 %v108, %v183
  %v185 = vpop.f32.mrf.mxu0
  %186 = vdwg.mxu0
  %187 = vmatprep.subr.mxu0 0.0
  %188 = vmatpush1.msra.mxu0 0.0
  %189 = vmatprep.subr.mxu0 0.0
  %190 = vmatpush1.msra.mxu0 0.0
  %191 = vmatprep.subr.mxu0 0.0
  %192 = vmatpush1.msra.mxu0 0.0
  %193 = vmatprep.subr.mxu0 0.0
  %194 = vmatpush1.msra.mxu0 0.0
  %195 = vmatprep.subr.mxu0 0.0
  %196 = vmatpush1.msra.mxu0 0.0
  %197 = vmatprep.subr.mxu0 0.0
  %198 = vmatpush1.msra.mxu0 0.0
  %199 = vmatprep.subr.mxu0 0.0
  %200 = vmatpush1.msra.mxu0 0.0
  %201 = vmatprep.subr.mxu0 0.0
  %202 = vmatpush1.msra.mxu0 0.0
  %203 = vmatprep.subr.mxu0 0.0
  %204 = vmatpush1.msra.mxu0 0.0
  %205 = vmatprep.subr.mxu0 0.0
  %206 = vmatpush1.msra.mxu0 0.0
  %207 = vmatprep.subr.mxu0 0.0
  %208 = vmatpush1.msra.mxu0 0.0
  %209 = vmatprep.subr.mxu0 0.0
  %210 = vmatpush1.msra.mxu0 0.0
  %211 = vmatprep.subr.mxu0 0.0
  %212 = vmatpush1.msra.mxu0 0.0
  %213 = vmatprep.subr.mxu0 0.0
  %214 = vmatpush1.msra.mxu0 0.0
  %215 = vmatprep.subr.mxu0 0.0
  %216 = vmatpush1.msra.mxu0 0.0
  %217 = vmatprep.subr.mxu0 0.0
  %v218 = vand.u32 %v33, 4294901760
  %v219 = vsub.f32 %v33, %v218
  %220 = vmatpush1.msra.mxu0 %v219
  %221 = vmatprep.subr.mxu0 0.0
  %222 = vmatpush2.msra.mxu0 0.0
  %223 = vmatprep.subr.mxu0 0.0
  %224 = vmatpush2.msra.mxu0 0.0
  %225 = vmatprep.subr.mxu0 0.0
  %226 = vmatpush2.msra.mxu0 0.0
  %227 = vmatprep.subr.mxu0 0.0
  %228 = vmatpush2.msra.mxu0 0.0
  %229 = vmatprep.subr.mxu0 0.0
  %230 = vmatpush2.msra.mxu0 0.0
  %231 = vmatprep.subr.mxu0 0.0
  %232 = vmatpush2.msra.mxu0 0.0
  %233 = vmatprep.subr.mxu0 0.0
  %234 = vmatpush2.msra.mxu0 0.0
  %235 = vmatprep.subr.mxu0 0.0
  %236 = vmatpush2.msra.mxu0 0.0
  %237 = vmatprep.subr.mxu0 0.0
  %238 = vmatpush2.msra.mxu0 0.0
  %239 = vmatprep.subr.mxu0 0.0
  %240 = vmatpush2.msra.mxu0 0.0
  %241 = vmatprep.subr.mxu0 0.0
  %242 = vmatpush2.msra.mxu0 0.0
  %243 = vmatprep.subr.mxu0 0.0
  %244 = vmatpush2.msra.mxu0 0.0
  %245 = vmatprep.subr.mxu0 0.0
  %246 = vmatpush2.msra.mxu0 0.0
  %247 = vmatprep.subr.mxu0 0.0
  %248 = vmatpush2.msra.mxu0 0.0
  %249 = vmatprep.subr.mxu0 0.0
  %250 = vmatpush2.msra.mxu0 0.0
  %251 = vmatprep.subr.mxu0 0.0
  %252 = vmatpush2.msra.mxu0 0.0
  %253 = vmatprep.mubr.f32.mxu0 0.0
  %v254 = vand.u32 %v29, 4294901760
  %v255 = vsub.f32 %v29, %v254
  %256 = vmatmul.mubr.f32.gmra.mxu0 %v255
  %v257 = vpop.f32.mrf.mxu0
  %v258 = vadd.f32 %v184, %v257
  %v259 = vpop.f32.mrf.mxu0
  %260 = vdwg.mxu0
  %261 = vmatprep.subr.mxu0 0.0
  %262 = vmatpush1.msra.mxu0 0.0
  %263 = vmatprep.subr.mxu0 0.0
  %264 = vmatpush1.msra.mxu0 0.0
  %265 = vmatprep.subr.mxu0 0.0
  %266 = vmatpush1.msra.mxu0 0.0
  %267 = vmatprep.subr.mxu0 0.0
  %268 = vmatpush1.msra.mxu0 0.0
  %269 = vmatprep.subr.mxu0 0.0
  %270 = vmatpush1.msra.mxu0 0.0
  %271 = vmatprep.subr.mxu0 0.0
  %272 = vmatpush1.msra.mxu0 0.0
  %273 = vmatprep.subr.mxu0 0.0
  %274 = vmatpush1.msra.mxu0 0.0
  %275 = vmatprep.subr.mxu0 0.0
  %276 = vmatpush1.msra.mxu0 0.0
  %277 = vmatprep.subr.mxu0 0.0
  %278 = vmatpush1.msra.mxu0 0.0
  %279 = vmatprep.subr.mxu0 0.0
  %280 = vmatpush1.msra.mxu0 0.0
  %281 = vmatprep.subr.mxu0 0.0
  %282 = vmatpush1.msra.mxu0 0.0
  %283 = vmatprep.subr.mxu0 0.0
  %284 = vmatpush1.msra.mxu0 0.0
  %285 = vmatprep.subr.mxu0 0.0
  %286 = vmatpush1.msra.mxu0 0.0
  %287 = vmatprep.subr.mxu0 0.0
  %288 = vmatpush1.msra.mxu0 0.0
  %289 = vmatprep.subr.mxu0 0.0
  %290 = vmatpush1.msra.mxu0 0.0
  %291 = vmatprep.subr.mxu0 0.0
  %v292 = vand.u32 %v33, 4294901760
  %293 = vmatpush1.msra.mxu0 %v292
  %294 = vmatprep.subr.mxu0 0.0
  %295 = vmatpush2.msra.mxu0 0.0
  %296 = vmatprep.subr.mxu0 0.0
  %297 = vmatpush2.msra.mxu0 0.0
  %298 = vmatprep.subr.mxu0 0.0
  %299 = vmatpush2.msra.mxu0 0.0
  %300 = vmatprep.subr.mxu0 0.0
  %301 = vmatpush2.msra.mxu0 0.0
  %302 = vmatprep.subr.mxu0 0.0
  %303 = vmatpush2.msra.mxu0 0.0
  %304 = vmatprep.subr.mxu0 0.0
  %305 = vmatpush2.msra.mxu0 0.0
  %306 = vmatprep.subr.mxu0 0.0
  %307 = vmatpush2.msra.mxu0 0.0
  %308 = vmatprep.subr.mxu0 0.0
  %309 = vmatpush2.msra.mxu0 0.0
  %310 = vmatprep.subr.mxu0 0.0
  %311 = vmatpush2.msra.mxu0 0.0
  %312 = vmatprep.subr.mxu0 0.0
  %313 = vmatpush2.msra.mxu0 0.0
  %314 = vmatprep.subr.mxu0 0.0
  %315 = vmatpush2.msra.mxu0 0.0
  %316 = vmatprep.subr.mxu0 0.0
  %317 = vmatpush2.msra.mxu0 0.0
  %318 = vmatprep.subr.mxu0 0.0
  %319 = vmatpush2.msra.mxu0 0.0
  %320 = vmatprep.subr.mxu0 0.0
  %321 = vmatpush2.msra.mxu0 0.0
  %322 = vmatprep.subr.mxu0 0.0
  %323 = vmatpush2.msra.mxu0 0.0
  %324 = vmatprep.subr.mxu0 0.0
  %325 = vmatpush2.msra.mxu0 0.0
  %326 = vmatprep.mubr.f32.mxu0 0.0
  %v327 = vand.u32 %v29, 4294901760
  %v328 = vsub.f32 %v29, %v327
  %v329 = vand.u32 %v328, 4294901760
  %330 = vmatmul.mubr.f32.gmra.mxu0 %v329
  %v331 = vpop.f32.mrf.mxu0
  %v332 = vadd.f32 %v258, %v331
  %v333 = vpop.f32.mrf.mxu0
  %334 = vdwg.mxu0
  %335 = vmatprep.subr.mxu0 0.0
  %336 = vmatpush1.msra.mxu0 0.0
  %337 = vmatprep.subr.mxu0 0.0
  %338 = vmatpush1.msra.mxu0 0.0
  %339 = vmatprep.subr.mxu0 0.0
  %340 = vmatpush1.msra.mxu0 0.0
  %341 = vmatprep.subr.mxu0 0.0
  %342 = vmatpush1.msra.mxu0 0.0
  %343 = vmatprep.subr.mxu0 0.0
  %344 = vmatpush1.msra.mxu0 0.0
  %345 = vmatprep.subr.mxu0 0.0
  %346 = vmatpush1.msra.mxu0 0.0
  %347 = vmatprep.subr.mxu0 0.0
  %348 = vmatpush1.msra.mxu0 0.0
  %349 = vmatprep.subr.mxu0 0.0
  %350 = vmatpush1.msra.mxu0 0.0
  %351 = vmatprep.subr.mxu0 0.0
  %352 = vmatpush1.msra.mxu0 0.0
  %353 = vmatprep.subr.mxu0 0.0
  %354 = vmatpush1.msra.mxu0 0.0
  %355 = vmatprep.subr.mxu0 0.0
  %356 = vmatpush1.msra.mxu0 0.0
  %357 = vmatprep.subr.mxu0 0.0
  %358 = vmatpush1.msra.mxu0 0.0
  %359 = vmatprep.subr.mxu0 0.0
  %360 = vmatpush1.msra.mxu0 0.0
  %361 = vmatprep.subr.mxu0 0.0
  %362 = vmatpush1.msra.mxu0 0.0
  %363 = vmatprep.subr.mxu0 0.0
  %364 = vmatpush1.msra.mxu0 0.0
  %365 = vmatprep.subr.mxu0 0.0
  %v366 = vand.u32 %v33, 4294901760
  %v367 = vsub.f32 %v33, %v366
  %v368 = vand.u32 %v367, 4294901760
  %369 = vmatpush1.msra.mxu0 %v368
  %370 = vmatprep.subr.mxu0 0.0
  %371 = vmatpush2.msra.mxu0 0.0
  %372 = vmatprep.subr.mxu0 0.0
  %373 = vmatpush2.msra.mxu0 0.0
  %374 = vmatprep.subr.mxu0 0.0
  %375 = vmatpush2.msra.mxu0 0.0
  %376 = vmatprep.subr.mxu0 0.0
  %377 = vmatpush2.msra.mxu0 0.0
  %378 = vmatprep.subr.mxu0 0.0
  %379 = vmatpush2.msra.mxu0 0.0
  %380 = vmatprep.subr.mxu0 0.0
  %381 = vmatpush2.msra.mxu0 0.0
  %382 = vmatprep.subr.mxu0 0.0
  %383 = vmatpush2.msra.mxu0 0.0
  %384 = vmatprep.subr.mxu0 0.0
  %385 = vmatpush2.msra.mxu0 0.0
  %386 = vmatprep.subr.mxu0 0.0
  %387 = vmatpush2.msra.mxu0 0.0
  %388 = vmatprep.subr.mxu0 0.0
  %389 = vmatpush2.msra.mxu0 0.0
  %390 = vmatprep.subr.mxu0 0.0
  %391 = vmatpush2.msra.mxu0 0.0
  %392 = vmatprep.subr.mxu0 0.0
  %393 = vmatpush2.msra.mxu0 0.0
  %394 = vmatprep.subr.mxu0 0.0
  %395 = vmatpush2.msra.mxu0 0.0
  %396 = vmatprep.subr.mxu0 0.0
  %397 = vmatpush2.msra.mxu0 0.0
  %398 = vmatprep.subr.mxu0 0.0
  %399 = vmatpush2.msra.mxu0 0.0
  %400 = vmatprep.subr.mxu0 0.0
  %401 = vmatpush2.msra.mxu0 0.0
  %402 = vmatprep.mubr.f32.mxu0 0.0
  %v403 = vand.u32 %v29, 4294901760
  %404 = vmatmul.mubr.f32.gmra.mxu0 %v403
  %v405 = vpop.f32.mrf.mxu0
  %v406 = vadd.f32 %v332, %v405
  %v407 = vpop.f32.mrf.mxu0
  %408 = vdwg.mxu0
  %409 = vmatprep.subr.mxu0 0.0
  %410 = vmatpush1.msra.mxu0 0.0
  %411 = vmatprep.subr.mxu0 0.0
  %412 = vmatpush1.msra.mxu0 0.0
  %413 = vmatprep.subr.mxu0 0.0
  %414 = vmatpush1.msra.mxu0 0.0
  %415 = vmatprep.subr.mxu0 0.0
  %416 = vmatpush1.msra.mxu0 0.0
  %417 = vmatprep.subr.mxu0 0.0
  %418 = vmatpush1.msra.mxu0 0.0
  %419 = vmatprep.subr.mxu0 0.0
  %420 = vmatpush1.msra.mxu0 0.0
  %421 = vmatprep.subr.mxu0 0.0
  %422 = vmatpush1.msra.mxu0 0.0
  %423 = vmatprep.subr.mxu0 0.0
  %424 = vmatpush1.msra.mxu0 0.0
  %425 = vmatprep.subr.mxu0 0.0
  %426 = vmatpush1.msra.mxu0 0.0
  %427 = vmatprep.subr.mxu0 0.0
  %428 = vmatpush1.msra.mxu0 0.0
  %429 = vmatprep.subr.mxu0 0.0
  %430 = vmatpush1.msra.mxu0 0.0
  %431 = vmatprep.subr.mxu0 0.0
  %432 = vmatpush1.msra.mxu0 0.0
  %433 = vmatprep.subr.mxu0 0.0
  %434 = vmatpush1.msra.mxu0 0.0
  %435 = vmatprep.subr.mxu0 0.0
  %436 = vmatpush1.msra.mxu0 0.0
  %437 = vmatprep.subr.mxu0 0.0
  %438 = vmatpush1.msra.mxu0 0.0
  %439 = vmatprep.subr.mxu0 0.0
  %v440 = vand.u32 %v33, 4294901760
  %441 = vmatpush1.msra.mxu0 %v440
  %442 = vmatprep.subr.mxu0 0.0
  %443 = vmatpush2.msra.mxu0 0.0
  %444 = vmatprep.subr.mxu0 0.0
  %445 = vmatpush2.msra.mxu0 0.0
  %446 = vmatprep.subr.mxu0 0.0
  %447 = vmatpush2.msra.mxu0 0.0
  %448 = vmatprep.subr.mxu0 0.0
  %449 = vmatpush2.msra.mxu0 0.0
  %450 = vmatprep.subr.mxu0 0.0
  %451 = vmatpush2.msra.mxu0 0.0
  %452 = vmatprep.subr.mxu0 0.0
  %453 = vmatpush2.msra.mxu0 0.0
  %454 = vmatprep.subr.mxu0 0.0
  %455 = vmatpush2.msra.mxu0 0.0
  %456 = vmatprep.subr.mxu0 0.0
  %457 = vmatpush2.msra.mxu0 0.0
  %458 = vmatprep.subr.mxu0 0.0
  %459 = vmatpush2.msra.mxu0 0.0
  %460 = vmatprep.subr.mxu0 0.0
  %461 = vmatpush2.msra.mxu0 0.0
  %462 = vmatprep.subr.mxu0 0.0
  %463 = vmatpush2.msra.mxu0 0.0
  %464 = vmatprep.subr.mxu0 0.0
  %465 = vmatpush2.msra.mxu0 0.0
  %466 = vmatprep.subr.mxu0 0.0
  %467 = vmatpush2.msra.mxu0 0.0
  %468 = vmatprep.subr.mxu0 0.0
  %469 = vmatpush2.msra.mxu0 0.0
  %470 = vmatprep.subr.mxu0 0.0
  %471 = vmatpush2.msra.mxu0 0.0
  %472 = vmatprep.subr.mxu0 0.0
  %473 = vmatpush2.msra.mxu0 0.0
  %474 = vmatprep.mubr.f32.mxu0 0.0
  %v475 = vand.u32 %v29, 4294901760
  %476 = vmatmul.mubr.f32.gmra.mxu0 %v475
  %v477 = vpop.f32.mrf.mxu0
  %v478 = vadd.f32 %v406, %v477
  %v479 = vpop.f32.mrf.mxu0
  %480 = vdwg.mxu0
  %vm481 = vcmp.ge.f32.partialorder %v478, -3.0
  %vm482 = vcmp.le.f32.partialorder %v478, 3.0
  %vm483 = vmand %vm481, %vm482
  %v484 = vmax.f32 %v478, -3.0
  %v485 = vmin.f32 %v484, 3.0
  %v486 = vld [vmem:[%s3] sm:$0x7]
  %vm487 = vcmask 23552
  %v489 = vsel %vm487, %v485, 0
  %vm491 = vcmask 1042432
  %v493 = vsel %vm491, %v486, 0
  %495 = vmatprep.subr.mxu0 0.0
  %496 = vmatpush1.msra.mxu0 0.0
  %497 = vmatprep.subr.mxu0 0.0
  %498 = vmatpush1.msra.mxu0 0.0
  %499 = vmatprep.subr.mxu0 0.0
  %500 = vmatpush1.msra.mxu0 0.0
  %501 = vmatprep.subr.mxu0 0.0
  %502 = vmatpush1.msra.mxu0 0.0
  %503 = vmatprep.subr.mxu0 0.0
  %504 = vmatpush1.msra.mxu0 0.0
  %505 = vmatprep.subr.mxu0 0.0
  %506 = vmatpush1.msra.mxu0 0.0
  %507 = vmatprep.subr.mxu0 0.0
  %508 = vmatpush1.msra.mxu0 0.0
  %509 = vmatprep.subr.mxu0 0.0
  %510 = vmatpush1.msra.mxu0 0.0
  %511 = vmatprep.subr.mxu0 0.0
  %512 = vmatpush1.msra.mxu0 0.0
  %513 = vmatprep.subr.mxu0 0.0
  %514 = vmatpush1.msra.mxu0 0.0
  %515 = vmatprep.subr.mxu0 0.0
  %516 = vmatpush1.msra.mxu0 0.0
  %517 = vmatprep.subr.mxu0 0.0
  %518 = vmatpush1.msra.mxu0 0.0
  %519 = vmatprep.subr.mxu0 0.0
  %520 = vmatpush1.msra.mxu0 0.0
  %521 = vmatprep.subr.mxu0 0.0
  %522 = vmatpush1.msra.mxu0 0.0
  %523 = vmatprep.subr.mxu0 0.0
  %524 = vmatpush1.msra.mxu0 0.0
  %525 = vmatprep.subr.mxu0 0.0
  %v526 = vand.u32 %v493, 4294901760
  %527 = vmatpush1.msra.mxu0 %v526
  %528 = vmatprep.subr.mxu0 0.0
  %529 = vmatpush2.msra.mxu0 0.0
  %530 = vmatprep.subr.mxu0 0.0
  %531 = vmatpush2.msra.mxu0 0.0
  %532 = vmatprep.subr.mxu0 0.0
  %533 = vmatpush2.msra.mxu0 0.0
  %534 = vmatprep.subr.mxu0 0.0
  %535 = vmatpush2.msra.mxu0 0.0
  %536 = vmatprep.subr.mxu0 0.0
  %537 = vmatpush2.msra.mxu0 0.0
  %538 = vmatprep.subr.mxu0 0.0
  %539 = vmatpush2.msra.mxu0 0.0
  %540 = vmatprep.subr.mxu0 0.0
  %541 = vmatpush2.msra.mxu0 0.0
  %542 = vmatprep.subr.mxu0 0.0
  %543 = vmatpush2.msra.mxu0 0.0
  %544 = vmatprep.subr.mxu0 0.0
  %545 = vmatpush2.msra.mxu0 0.0
  %546 = vmatprep.subr.mxu0 0.0
  %547 = vmatpush2.msra.mxu0 0.0
  %548 = vmatprep.subr.mxu0 0.0
  %549 = vmatpush2.msra.mxu0 0.0
  %550 = vmatprep.subr.mxu0 0.0
  %551 = vmatpush2.msra.mxu0 0.0
  %552 = vmatprep.subr.mxu0 0.0
  %553 = vmatpush2.msra.mxu0 0.0
  %554 = vmatprep.subr.mxu0 0.0
  %555 = vmatpush2.msra.mxu0 0.0
  %556 = vmatprep.subr.mxu0 0.0
  %557 = vmatpush2.msra.mxu0 0.0
  %558 = vmatprep.subr.mxu0 0.0
  %559 = vmatpush2.msra.mxu0 0.0
  %560 = vmatprep.mubr.f32.mxu0 0.0
  %v561 = vand.u32 %v489, 4294901760
  %v562 = vsub.f32 %v489, %v561
  %v563 = vand.u32 %v562, 4294901760
  %v564 = vsub.f32 %v562, %v563
  %v565 = vand.u32 %v564, 4294901760
  %566 = vmatmul.mubr.f32.gmra.mxu0 %v565
  %v567 = vpop.f32.mrf.mxu0
  %v568 = vadd.f32 0.0, %v567
  %v569 = vpop.f32.mrf.mxu0
  %570 = vdwg.mxu0
  %571 = vmatprep.subr.mxu0 0.0
  %572 = vmatpush1.msra.mxu0 0.0
  %573 = vmatprep.subr.mxu0 0.0
  %574 = vmatpush1.msra.mxu0 0.0
  %575 = vmatprep.subr.mxu0 0.0
  %576 = vmatpush1.msra.mxu0 0.0
  %577 = vmatprep.subr.mxu0 0.0
  %578 = vmatpush1.msra.mxu0 0.0
  %579 = vmatprep.subr.mxu0 0.0
  %580 = vmatpush1.msra.mxu0 0.0
  %581 = vmatprep.subr.mxu0 0.0
  %582 = vmatpush1.msra.mxu0 0.0
  %583 = vmatprep.subr.mxu0 0.0
  %584 = vmatpush1.msra.mxu0 0.0
  %585 = vmatprep.subr.mxu0 0.0
  %586 = vmatpush1.msra.mxu0 0.0
  %587 = vmatprep.subr.mxu0 0.0
  %588 = vmatpush1.msra.mxu0 0.0
  %589 = vmatprep.subr.mxu0 0.0
  %590 = vmatpush1.msra.mxu0 0.0
  %591 = vmatprep.subr.mxu0 0.0
  %592 = vmatpush1.msra.mxu0 0.0
  %593 = vmatprep.subr.mxu0 0.0
  %594 = vmatpush1.msra.mxu0 0.0
  %595 = vmatprep.subr.mxu0 0.0
  %596 = vmatpush1.msra.mxu0 0.0
  %597 = vmatprep.subr.mxu0 0.0
  %598 = vmatpush1.msra.mxu0 0.0
  %599 = vmatprep.subr.mxu0 0.0
  %600 = vmatpush1.msra.mxu0 0.0
  %601 = vmatprep.subr.mxu0 0.0
  %v602 = vand.u32 %v493, 4294901760
  %v603 = vsub.f32 %v493, %v602
  %v604 = vand.u32 %v603, 4294901760
  %v605 = vsub.f32 %v603, %v604
  %v606 = vand.u32 %v605, 4294901760
  %607 = vmatpush1.msra.mxu0 %v606
  %608 = vmatprep.subr.mxu0 0.0
  %609 = vmatpush2.msra.mxu0 0.0
  %610 = vmatprep.subr.mxu0 0.0
  %611 = vmatpush2.msra.mxu0 0.0
  %612 = vmatprep.subr.mxu0 0.0
  %613 = vmatpush2.msra.mxu0 0.0
  %614 = vmatprep.subr.mxu0 0.0
  %615 = vmatpush2.msra.mxu0 0.0
  %616 = vmatprep.subr.mxu0 0.0
  %617 = vmatpush2.msra.mxu0 0.0
  %618 = vmatprep.subr.mxu0 0.0
  %619 = vmatpush2.msra.mxu0 0.0
  %620 = vmatprep.subr.mxu0 0.0
  %621 = vmatpush2.msra.mxu0 0.0
  %622 = vmatprep.subr.mxu0 0.0
  %623 = vmatpush2.msra.mxu0 0.0
  %624 = vmatprep.subr.mxu0 0.0
  %625 = vmatpush2.msra.mxu0 0.0
  %626 = vmatprep.subr.mxu0 0.0
  %627 = vmatpush2.msra.mxu0 0.0
  %628 = vmatprep.subr.mxu0 0.0
  %629 = vmatpush2.msra.mxu0 0.0
  %630 = vmatprep.subr.mxu0 0.0
  %631 = vmatpush2.msra.mxu0 0.0
  %632 = vmatprep.subr.mxu0 0.0
  %633 = vmatpush2.msra.mxu0 0.0
  %634 = vmatprep.subr.mxu0 0.0
  %635 = vmatpush2.msra.mxu0 0.0
  %636 = vmatprep.subr.mxu0 0.0
  %637 = vmatpush2.msra.mxu0 0.0
  %638 = vmatprep.subr.mxu0 0.0
  %639 = vmatpush2.msra.mxu0 0.0
  %640 = vmatprep.mubr.f32.mxu0 0.0
  %v641 = vand.u32 %v489, 4294901760
  %642 = vmatmul.mubr.f32.gmra.mxu0 %v641
  %v643 = vpop.f32.mrf.mxu0
  %v644 = vadd.f32 %v568, %v643
  %v645 = vpop.f32.mrf.mxu0
  %646 = vdwg.mxu0
  %647 = vmatprep.subr.mxu0 0.0
  %648 = vmatpush1.msra.mxu0 0.0
  %649 = vmatprep.subr.mxu0 0.0
  %650 = vmatpush1.msra.mxu0 0.0
  %651 = vmatprep.subr.mxu0 0.0
  %652 = vmatpush1.msra.mxu0 0.0
  %653 = vmatprep.subr.mxu0 0.0
  %654 = vmatpush1.msra.mxu0 0.0
  %655 = vmatprep.subr.mxu0 0.0
  %656 = vmatpush1.msra.mxu0 0.0
  %657 = vmatprep.subr.mxu0 0.0
  %658 = vmatpush1.msra.mxu0 0.0
  %659 = vmatprep.subr.mxu0 0.0
  %660 = vmatpush1.msra.mxu0 0.0
  %661 = vmatprep.subr.mxu0 0.0
  %662 = vmatpush1.msra.mxu0 0.0
  %663 = vmatprep.subr.mxu0 0.0
  %664 = vmatpush1.msra.mxu0 0.0
  %665 = vmatprep.subr.mxu0 0.0
  %666 = vmatpush1.msra.mxu0 0.0
  %667 = vmatprep.subr.mxu0 0.0
  %668 = vmatpush1.msra.mxu0 0.0
  %669 = vmatprep.subr.mxu0 0.0
  %670 = vmatpush1.msra.mxu0 0.0
  %671 = vmatprep.subr.mxu0 0.0
  %672 = vmatpush1.msra.mxu0 0.0
  %673 = vmatprep.subr.mxu0 0.0
  %674 = vmatpush1.msra.mxu0 0.0
  %675 = vmatprep.subr.mxu0 0.0
  %676 = vmatpush1.msra.mxu0 0.0
  %677 = vmatprep.subr.mxu0 0.0
  %v678 = vand.u32 %v493, 4294901760
  %v679 = vsub.f32 %v493, %v678
  %680 = vmatpush1.msra.mxu0 %v679
  %681 = vmatprep.subr.mxu0 0.0
  %682 = vmatpush2.msra.mxu0 0.0
  %683 = vmatprep.subr.mxu0 0.0
  %684 = vmatpush2.msra.mxu0 0.0
  %685 = vmatprep.subr.mxu0 0.0
  %686 = vmatpush2.msra.mxu0 0.0
  %687 = vmatprep.subr.mxu0 0.0
  %688 = vmatpush2.msra.mxu0 0.0
  %689 = vmatprep.subr.mxu0 0.0
  %690 = vmatpush2.msra.mxu0 0.0
  %691 = vmatprep.subr.mxu0 0.0
  %692 = vmatpush2.msra.mxu0 0.0
  %693 = vmatprep.subr.mxu0 0.0
  %694 = vmatpush2.msra.mxu0 0.0
  %695 = vmatprep.subr.mxu0 0.0
  %696 = vmatpush2.msra.mxu0 0.0
  %697 = vmatprep.subr.mxu0 0.0
  %698 = vmatpush2.msra.mxu0 0.0
  %699 = vmatprep.subr.mxu0 0.0
  %700 = vmatpush2.msra.mxu0 0.0
  %701 = vmatprep.subr.mxu0 0.0
  %702 = vmatpush2.msra.mxu0 0.0
  %703 = vmatprep.subr.mxu0 0.0
  %704 = vmatpush2.msra.mxu0 0.0
  %705 = vmatprep.subr.mxu0 0.0
  %706 = vmatpush2.msra.mxu0 0.0
  %707 = vmatprep.subr.mxu0 0.0
  %708 = vmatpush2.msra.mxu0 0.0
  %709 = vmatprep.subr.mxu0 0.0
  %710 = vmatpush2.msra.mxu0 0.0
  %711 = vmatprep.subr.mxu0 0.0
  %712 = vmatpush2.msra.mxu0 0.0
  %713 = vmatprep.mubr.f32.mxu0 0.0
  %v714 = vand.u32 %v489, 4294901760
  %v715 = vsub.f32 %v489, %v714
  %716 = vmatmul.mubr.f32.gmra.mxu0 %v715
  %v717 = vpop.f32.mrf.mxu0
  %v718 = vadd.f32 %v644, %v717
  %v719 = vpop.f32.mrf.mxu0
  %720 = vdwg.mxu0
  %721 = vmatprep.subr.mxu0 0.0
  %722 = vmatpush1.msra.mxu0 0.0
  %723 = vmatprep.subr.mxu0 0.0
  %724 = vmatpush1.msra.mxu0 0.0
  %725 = vmatprep.subr.mxu0 0.0
  %726 = vmatpush1.msra.mxu0 0.0
  %727 = vmatprep.subr.mxu0 0.0
  %728 = vmatpush1.msra.mxu0 0.0
  %729 = vmatprep.subr.mxu0 0.0
  %730 = vmatpush1.msra.mxu0 0.0
  %731 = vmatprep.subr.mxu0 0.0
  %732 = vmatpush1.msra.mxu0 0.0
  %733 = vmatprep.subr.mxu0 0.0
  %734 = vmatpush1.msra.mxu0 0.0
  %735 = vmatprep.subr.mxu0 0.0
  %736 = vmatpush1.msra.mxu0 0.0
  %737 = vmatprep.subr.mxu0 0.0
  %738 = vmatpush1.msra.mxu0 0.0
  %739 = vmatprep.subr.mxu0 0.0
  %740 = vmatpush1.msra.mxu0 0.0
  %741 = vmatprep.subr.mxu0 0.0
  %742 = vmatpush1.msra.mxu0 0.0
  %743 = vmatprep.subr.mxu0 0.0
  %744 = vmatpush1.msra.mxu0 0.0
  %745 = vmatprep.subr.mxu0 0.0
  %746 = vmatpush1.msra.mxu0 0.0
  %747 = vmatprep.subr.mxu0 0.0
  %748 = vmatpush1.msra.mxu0 0.0
  %749 = vmatprep.subr.mxu0 0.0
  %750 = vmatpush1.msra.mxu0 0.0
  %751 = vmatprep.subr.mxu0 0.0
  %v752 = vand.u32 %v493, 4294901760
  %753 = vmatpush1.msra.mxu0 %v752
  %754 = vmatprep.subr.mxu0 0.0
  %755 = vmatpush2.msra.mxu0 0.0
  %756 = vmatprep.subr.mxu0 0.0
  %757 = vmatpush2.msra.mxu0 0.0
  %758 = vmatprep.subr.mxu0 0.0
  %759 = vmatpush2.msra.mxu0 0.0
  %760 = vmatprep.subr.mxu0 0.0
  %761 = vmatpush2.msra.mxu0 0.0
  %762 = vmatprep.subr.mxu0 0.0
  %763 = vmatpush2.msra.mxu0 0.0
  %764 = vmatprep.subr.mxu0 0.0
  %765 = vmatpush2.msra.mxu0 0.0
  %766 = vmatprep.subr.mxu0 0.0
  %767 = vmatpush2.msra.mxu0 0.0
  %768 = vmatprep.subr.mxu0 0.0
  %769 = vmatpush2.msra.mxu0 0.0
  %770 = vmatprep.subr.mxu0 0.0
  %771 = vmatpush2.msra.mxu0 0.0
  %772 = vmatprep.subr.mxu0 0.0
  %773 = vmatpush2.msra.mxu0 0.0
  %774 = vmatprep.subr.mxu0 0.0
  %775 = vmatpush2.msra.mxu0 0.0
  %776 = vmatprep.subr.mxu0 0.0
  %777 = vmatpush2.msra.mxu0 0.0
  %778 = vmatprep.subr.mxu0 0.0
  %779 = vmatpush2.msra.mxu0 0.0
  %780 = vmatprep.subr.mxu0 0.0
  %781 = vmatpush2.msra.mxu0 0.0
  %782 = vmatprep.subr.mxu0 0.0
  %783 = vmatpush2.msra.mxu0 0.0
  %784 = vmatprep.subr.mxu0 0.0
  %785 = vmatpush2.msra.mxu0 0.0
  %786 = vmatprep.mubr.f32.mxu0 0.0
  %v787 = vand.u32 %v489, 4294901760
  %v788 = vsub.f32 %v489, %v787
  %v789 = vand.u32 %v788, 4294901760
  %790 = vmatmul.mubr.f32.gmra.mxu0 %v789
  %v791 = vpop.f32.mrf.mxu0
  %v792 = vadd.f32 %v718, %v791
  %v793 = vpop.f32.mrf.mxu0
  %794 = vdwg.mxu0
  %795 = vmatprep.subr.mxu0 0.0
  %796 = vmatpush1.msra.mxu0 0.0
  %797 = vmatprep.subr.mxu0 0.0
  %798 = vmatpush1.msra.mxu0 0.0
  %799 = vmatprep.subr.mxu0 0.0
  %800 = vmatpush1.msra.mxu0 0.0
  %801 = vmatprep.subr.mxu0 0.0
  %802 = vmatpush1.msra.mxu0 0.0
  %803 = vmatprep.subr.mxu0 0.0
  %804 = vmatpush1.msra.mxu0 0.0
  %805 = vmatprep.subr.mxu0 0.0
  %806 = vmatpush1.msra.mxu0 0.0
  %807 = vmatprep.subr.mxu0 0.0
  %808 = vmatpush1.msra.mxu0 0.0
  %809 = vmatprep.subr.mxu0 0.0
  %810 = vmatpush1.msra.mxu0 0.0
  %811 = vmatprep.subr.mxu0 0.0
  %812 = vmatpush1.msra.mxu0 0.0
  %813 = vmatprep.subr.mxu0 0.0
  %814 = vmatpush1.msra.mxu0 0.0
  %815 = vmatprep.subr.mxu0 0.0
  %816 = vmatpush1.msra.mxu0 0.0
  %817 = vmatprep.subr.mxu0 0.0
  %818 = vmatpush1.msra.mxu0 0.0
  %819 = vmatprep.subr.mxu0 0.0
  %820 = vmatpush1.msra.mxu0 0.0
  %821 = vmatprep.subr.mxu0 0.0
  %822 = vmatpush1.msra.mxu0 0.0
  %823 = vmatprep.subr.mxu0 0.0
  %824 = vmatpush1.msra.mxu0 0.0
  %825 = vmatprep.subr.mxu0 0.0
  %v826 = vand.u32 %v493, 4294901760
  %v827 = vsub.f32 %v493, %v826
  %v828 = vand.u32 %v827, 4294901760
  %829 = vmatpush1.msra.mxu0 %v828
  %830 = vmatprep.subr.mxu0 0.0
  %831 = vmatpush2.msra.mxu0 0.0
  %832 = vmatprep.subr.mxu0 0.0
  %833 = vmatpush2.msra.mxu0 0.0
  %834 = vmatprep.subr.mxu0 0.0
  %835 = vmatpush2.msra.mxu0 0.0
  %836 = vmatprep.subr.mxu0 0.0
  %837 = vmatpush2.msra.mxu0 0.0
  %838 = vmatprep.subr.mxu0 0.0
  %839 = vmatpush2.msra.mxu0 0.0
  %840 = vmatprep.subr.mxu0 0.0
  %841 = vmatpush2.msra.mxu0 0.0
  %842 = vmatprep.subr.mxu0 0.0
  %843 = vmatpush2.msra.mxu0 0.0
  %844 = vmatprep.subr.mxu0 0.0
  %845 = vmatpush2.msra.mxu0 0.0
  %846 = vmatprep.subr.mxu0 0.0
  %847 = vmatpush2.msra.mxu0 0.0
  %848 = vmatprep.subr.mxu0 0.0
  %849 = vmatpush2.msra.mxu0 0.0
  %850 = vmatprep.subr.mxu0 0.0
  %851 = vmatpush2.msra.mxu0 0.0
  %852 = vmatprep.subr.mxu0 0.0
  %853 = vmatpush2.msra.mxu0 0.0
  %854 = vmatprep.subr.mxu0 0.0
  %855 = vmatpush2.msra.mxu0 0.0
  %856 = vmatprep.subr.mxu0 0.0
  %857 = vmatpush2.msra.mxu0 0.0
  %858 = vmatprep.subr.mxu0 0.0
  %859 = vmatpush2.msra.mxu0 0.0
  %860 = vmatprep.subr.mxu0 0.0
  %861 = vmatpush2.msra.mxu0 0.0
  %862 = vmatprep.mubr.f32.mxu0 0.0
  %v863 = vand.u32 %v489, 4294901760
  %864 = vmatmul.mubr.f32.gmra.mxu0 %v863
  %v865 = vpop.f32.mrf.mxu0
  %v866 = vadd.f32 %v792, %v865
  %v867 = vpop.f32.mrf.mxu0
  %868 = vdwg.mxu0
  %869 = vmatprep.subr.mxu0 0.0
  %870 = vmatpush1.msra.mxu0 0.0
  %871 = vmatprep.subr.mxu0 0.0
  %872 = vmatpush1.msra.mxu0 0.0
  %873 = vmatprep.subr.mxu0 0.0
  %874 = vmatpush1.msra.mxu0 0.0
  %875 = vmatprep.subr.mxu0 0.0
  %876 = vmatpush1.msra.mxu0 0.0
  %877 = vmatprep.subr.mxu0 0.0
  %878 = vmatpush1.msra.mxu0 0.0
  %879 = vmatprep.subr.mxu0 0.0
  %880 = vmatpush1.msra.mxu0 0.0
  %881 = vmatprep.subr.mxu0 0.0
  %882 = vmatpush1.msra.mxu0 0.0
  %883 = vmatprep.subr.mxu0 0.0
  %884 = vmatpush1.msra.mxu0 0.0
  %885 = vmatprep.subr.mxu0 0.0
  %886 = vmatpush1.msra.mxu0 0.0
  %887 = vmatprep.subr.mxu0 0.0
  %888 = vmatpush1.msra.mxu0 0.0
  %889 = vmatprep.subr.mxu0 0.0
  %890 = vmatpush1.msra.mxu0 0.0
  %891 = vmatprep.subr.mxu0 0.0
  %892 = vmatpush1.msra.mxu0 0.0
  %893 = vmatprep.subr.mxu0 0.0
  %894 = vmatpush1.msra.mxu0 0.0
  %895 = vmatprep.subr.mxu0 0.0
  %896 = vmatpush1.msra.mxu0 0.0
  %897 = vmatprep.subr.mxu0 0.0
  %898 = vmatpush1.msra.mxu0 0.0
  %899 = vmatprep.subr.mxu0 0.0
  %v900 = vand.u32 %v493, 4294901760
  %901 = vmatpush1.msra.mxu0 %v900
  %902 = vmatprep.subr.mxu0 0.0
  %903 = vmatpush2.msra.mxu0 0.0
  %904 = vmatprep.subr.mxu0 0.0
  %905 = vmatpush2.msra.mxu0 0.0
  %906 = vmatprep.subr.mxu0 0.0
  %907 = vmatpush2.msra.mxu0 0.0
  %908 = vmatprep.subr.mxu0 0.0
  %909 = vmatpush2.msra.mxu0 0.0
  %910 = vmatprep.subr.mxu0 0.0
  %911 = vmatpush2.msra.mxu0 0.0
  %912 = vmatprep.subr.mxu0 0.0
  %913 = vmatpush2.msra.mxu0 0.0
  %914 = vmatprep.subr.mxu0 0.0
  %915 = vmatpush2.msra.mxu0 0.0
  %916 = vmatprep.subr.mxu0 0.0
  %917 = vmatpush2.msra.mxu0 0.0
  %918 = vmatprep.subr.mxu0 0.0
  %919 = vmatpush2.msra.mxu0 0.0
  %920 = vmatprep.subr.mxu0 0.0
  %921 = vmatpush2.msra.mxu0 0.0
  %922 = vmatprep.subr.mxu0 0.0
  %923 = vmatpush2.msra.mxu0 0.0
  %924 = vmatprep.subr.mxu0 0.0
  %925 = vmatpush2.msra.mxu0 0.0
  %926 = vmatprep.subr.mxu0 0.0
  %927 = vmatpush2.msra.mxu0 0.0
  %928 = vmatprep.subr.mxu0 0.0
  %929 = vmatpush2.msra.mxu0 0.0
  %930 = vmatprep.subr.mxu0 0.0
  %931 = vmatpush2.msra.mxu0 0.0
  %932 = vmatprep.subr.mxu0 0.0
  %933 = vmatpush2.msra.mxu0 0.0
  %934 = vmatprep.mubr.f32.mxu0 0.0
  %v935 = vand.u32 %v489, 4294901760
  %936 = vmatmul.mubr.f32.gmra.mxu0 %v935
  %v937 = vpop.f32.mrf.mxu0
  %v938 = vadd.f32 %v866, %v937
  %v939 = vpop.f32.mrf.mxu0
  %940 = vdwg.mxu0
  %v941 = vld [vmem:[%s4] sm:$0x1]
  %v942 = vld [vmem:[%s4 + $0x1] sm:$0x1]
  %v943 = vlaneseq
  %v944 = vshrl.u32 %v943, 7
  %v945 = vsub.s32 0, %v944
  %v946 = vrot.slane %v941, %v945
  %vm947 = vcmp.ge.f32.partialorder %v938, %v946
  %v948 = vlaneseq
  %v949 = vshrl.u32 %v948, 7
  %v950 = vsub.s32 0, %v949
  %v951 = vrot.slane %v942, %v950
  %vm952 = vcmp.lt.f32.partialorder %v938, %v951
  %vm953 = vmand %vm947, %vm952
  %v954 = vsel %vm953, 1, 0
  %v955 = vcvt.s32.f32 %v954
  %v956 = vld [vmem:[%s5] sm:$0xff]
  %v957 = vld [vmem:[%s5 + $0x8] sm:$0xff]
  %v958 = vld [vmem:[%s5 + $0x10] sm:$0xff]
  %v959 = vld [vmem:[%s5 + $0x18] sm:$0xff]
  %v960 = vld [vmem:[%s5 + $0x20] sm:$0xff]
  %v961 = vld [vmem:[%s5 + $0x28] sm:$0xff]
  %v962 = vld [vmem:[%s5 + $0x30] sm:$0xff]
  %v963 = vld [vmem:[%s5 + $0x38] sm:$0xff]
  %v964 = vld [vmem:[%s5 + $0x40] sm:$0xff]
  %vm965 = vcmask 588800
  %v967 = vsel %vm965, %v955, 0
  %969 = vmatprep.subr.mxu0 0.0
  %970 = vmatpush1.msra.mxu0 0.0
  %971 = vmatprep.subr.mxu0 0.0
  %972 = vmatpush1.msra.mxu0 0.0
  %973 = vmatprep.subr.mxu0 0.0
  %974 = vmatpush1.msra.mxu0 0.0
  %975 = vmatprep.subr.mxu0 0.0
  %976 = vmatpush1.msra.mxu0 0.0
  %977 = vmatprep.subr.mxu0 0.0
  %978 = vmatpush1.msra.mxu0 0.0
  %979 = vmatprep.subr.mxu0 0.0
  %980 = vmatpush1.msra.mxu0 0.0
  %981 = vmatprep.subr.mxu0 0.0
  %982 = vmatpush1.msra.mxu0 0.0
  %983 = vmatprep.subr.mxu0 0.0
  %v984 = vand.u32 %v964, 4294901760
  %985 = vmatpush1.msra.mxu0 %v984
  %986 = vmatprep.subr.mxu0 0.0
  %v987 = vand.u32 %v963, 4294901760
  %988 = vmatpush1.msra.mxu0 %v987
  %989 = vmatprep.subr.mxu0 0.0
  %v990 = vand.u32 %v962, 4294901760
  %991 = vmatpush1.msra.mxu0 %v990
  %992 = vmatprep.subr.mxu0 0.0
  %v993 = vand.u32 %v961, 4294901760
  %994 = vmatpush1.msra.mxu0 %v993
  %995 = vmatprep.subr.mxu0 0.0
  %v996 = vand.u32 %v960, 4294901760
  %997 = vmatpush1.msra.mxu0 %v996
  %998 = vmatprep.subr.mxu0 0.0
  %v999 = vand.u32 %v959, 4294901760
  %1000 = vmatpush1.msra.mxu0 %v999
  %1001 = vmatprep.subr.mxu0 0.0
  %v1002 = vand.u32 %v958, 4294901760
  %1003 = vmatpush1.msra.mxu0 %v1002
  %1004 = vmatprep.subr.mxu0 0.0
  %v1005 = vand.u32 %v957, 4294901760
  %1006 = vmatpush1.msra.mxu0 %v1005
  %1007 = vmatprep.subr.mxu0 0.0
  %v1008 = vand.u32 %v956, 4294901760
  %1009 = vmatpush1.msra.mxu0 %v1008
  %1010 = vmatprep.subr.mxu0 0.0
  %1011 = vmatpush2.msra.mxu0 0.0
  %1012 = vmatprep.subr.mxu0 0.0
  %1013 = vmatpush2.msra.mxu0 0.0
  %1014 = vmatprep.subr.mxu0 0.0
  %1015 = vmatpush2.msra.mxu0 0.0
  %1016 = vmatprep.subr.mxu0 0.0
  %1017 = vmatpush2.msra.mxu0 0.0
  %1018 = vmatprep.subr.mxu0 0.0
  %1019 = vmatpush2.msra.mxu0 0.0
  %1020 = vmatprep.subr.mxu0 0.0
  %1021 = vmatpush2.msra.mxu0 0.0
  %1022 = vmatprep.subr.mxu0 0.0
  %1023 = vmatpush2.msra.mxu0 0.0
  %1024 = vmatprep.subr.mxu0 0.0
  %1025 = vmatpush2.msra.mxu0 0.0
  %1026 = vmatprep.subr.mxu0 0.0
  %1027 = vmatpush2.msra.mxu0 0.0
  %1028 = vmatprep.subr.mxu0 0.0
  %1029 = vmatpush2.msra.mxu0 0.0
  %1030 = vmatprep.subr.mxu0 0.0
  %1031 = vmatpush2.msra.mxu0 0.0
  %1032 = vmatprep.subr.mxu0 0.0
  %1033 = vmatpush2.msra.mxu0 0.0
  %1034 = vmatprep.subr.mxu0 0.0
  %1035 = vmatpush2.msra.mxu0 0.0
  %1036 = vmatprep.subr.mxu0 0.0
  %1037 = vmatpush2.msra.mxu0 0.0
  %1038 = vmatprep.subr.mxu0 0.0
  %1039 = vmatpush2.msra.mxu0 0.0
  %1040 = vmatprep.subr.mxu0 0.0
  %1041 = vmatpush2.msra.mxu0 0.0
  %1042 = vmatprep.mubr.f32.mxu0 0.0
  %v1043 = vand.u32 %v967, 4294901760
  %v1044 = vsub.f32 %v967, %v1043
  %v1045 = vand.u32 %v1044, 4294901760
  %v1046 = vsub.f32 %v1044, %v1045
  %v1047 = vand.u32 %v1046, 4294901760
  %1048 = vmatmul.mubr.f32.gmra.mxu0 %v1047
  %v1049 = vpop.f32.mrf.mxu0
  %v1050 = vadd.f32 0.0, %v1049
  %v1051 = vpop.f32.mrf.mxu0
  %1052 = vdwg.mxu0
  %1053 = vmatprep.subr.mxu0 0.0
  %1054 = vmatpush1.msra.mxu0 0.0
  %1055 = vmatprep.subr.mxu0 0.0
  %1056 = vmatpush1.msra.mxu0 0.0
  %1057 = vmatprep.subr.mxu0 0.0
  %1058 = vmatpush1.msra.mxu0 0.0
  %1059 = vmatprep.subr.mxu0 0.0
  %1060 = vmatpush1.msra.mxu0 0.0
  %1061 = vmatprep.subr.mxu0 0.0
  %1062 = vmatpush1.msra.mxu0 0.0
  %1063 = vmatprep.subr.mxu0 0.0
  %1064 = vmatpush1.msra.mxu0 0.0
  %1065 = vmatprep.subr.mxu0 0.0
  %1066 = vmatpush1.msra.mxu0 0.0
  %1067 = vmatprep.subr.mxu0 0.0
  %v1068 = vand.u32 %v964, 4294901760
  %v1069 = vsub.f32 %v964, %v1068
  %v1070 = vand.u32 %v1069, 4294901760
  %v1071 = vsub.f32 %v1069, %v1070
  %v1072 = vand.u32 %v1071, 4294901760
  %1073 = vmatpush1.msra.mxu0 %v1072
  %1074 = vmatprep.subr.mxu0 0.0
  %v1075 = vand.u32 %v963, 4294901760
  %v1076 = vsub.f32 %v963, %v1075
  %v1077 = vand.u32 %v1076, 4294901760
  %v1078 = vsub.f32 %v1076, %v1077
  %v1079 = vand.u32 %v1078, 4294901760
  %1080 = vmatpush1.msra.mxu0 %v1079
  %1081 = vmatprep.subr.mxu0 0.0
  %v1082 = vand.u32 %v962, 4294901760
  %v1083 = vsub.f32 %v962, %v1082
  %v1084 = vand.u32 %v1083, 4294901760
  %v1085 = vsub.f32 %v1083, %v1084
  %v1086 = vand.u32 %v1085, 4294901760
  %1087 = vmatpush1.msra.mxu0 %v1086
  %1088 = vmatprep.subr.mxu0 0.0
  %v1089 = vand.u32 %v961, 4294901760
  %v1090 = vsub.f32 %v961, %v1089
  %v1091 = vand.u32 %v1090, 4294901760
  %v1092 = vsub.f32 %v1090, %v1091
  %v1093 = vand.u32 %v1092, 4294901760
  %1094 = vmatpush1.msra.mxu0 %v1093
  %1095 = vmatprep.subr.mxu0 0.0
  %v1096 = vand.u32 %v960, 4294901760
  %v1097 = vsub.f32 %v960, %v1096
  %v1098 = vand.u32 %v1097, 4294901760
  %v1099 = vsub.f32 %v1097, %v1098
  %v1100 = vand.u32 %v1099, 4294901760
  %1101 = vmatpush1.msra.mxu0 %v1100
  %1102 = vmatprep.subr.mxu0 0.0
  %v1103 = vand.u32 %v959, 4294901760
  %v1104 = vsub.f32 %v959, %v1103
  %v1105 = vand.u32 %v1104, 4294901760
  %v1106 = vsub.f32 %v1104, %v1105
  %v1107 = vand.u32 %v1106, 4294901760
  %1108 = vmatpush1.msra.mxu0 %v1107
  %1109 = vmatprep.subr.mxu0 0.0
  %v1110 = vand.u32 %v958, 4294901760
  %v1111 = vsub.f32 %v958, %v1110
  %v1112 = vand.u32 %v1111, 4294901760
  %v1113 = vsub.f32 %v1111, %v1112
  %v1114 = vand.u32 %v1113, 4294901760
  %1115 = vmatpush1.msra.mxu0 %v1114
  %1116 = vmatprep.subr.mxu0 0.0
  %v1117 = vand.u32 %v957, 4294901760
  %v1118 = vsub.f32 %v957, %v1117
  %v1119 = vand.u32 %v1118, 4294901760
  %v1120 = vsub.f32 %v1118, %v1119
  %v1121 = vand.u32 %v1120, 4294901760
  %1122 = vmatpush1.msra.mxu0 %v1121
  %1123 = vmatprep.subr.mxu0 0.0
  %v1124 = vand.u32 %v956, 4294901760
  %v1125 = vsub.f32 %v956, %v1124
  %v1126 = vand.u32 %v1125, 4294901760
  %v1127 = vsub.f32 %v1125, %v1126
  %v1128 = vand.u32 %v1127, 4294901760
  %1129 = vmatpush1.msra.mxu0 %v1128
  %1130 = vmatprep.subr.mxu0 0.0
  %1131 = vmatpush2.msra.mxu0 0.0
  %1132 = vmatprep.subr.mxu0 0.0
  %1133 = vmatpush2.msra.mxu0 0.0
  %1134 = vmatprep.subr.mxu0 0.0
  %1135 = vmatpush2.msra.mxu0 0.0
  %1136 = vmatprep.subr.mxu0 0.0
  %1137 = vmatpush2.msra.mxu0 0.0
  %1138 = vmatprep.subr.mxu0 0.0
  %1139 = vmatpush2.msra.mxu0 0.0
  %1140 = vmatprep.subr.mxu0 0.0
  %1141 = vmatpush2.msra.mxu0 0.0
  %1142 = vmatprep.subr.mxu0 0.0
  %1143 = vmatpush2.msra.mxu0 0.0
  %1144 = vmatprep.subr.mxu0 0.0
  %1145 = vmatpush2.msra.mxu0 0.0
  %1146 = vmatprep.subr.mxu0 0.0
  %1147 = vmatpush2.msra.mxu0 0.0
  %1148 = vmatprep.subr.mxu0 0.0
  %1149 = vmatpush2.msra.mxu0 0.0
  %1150 = vmatprep.subr.mxu0 0.0
  %1151 = vmatpush2.msra.mxu0 0.0
  %1152 = vmatprep.subr.mxu0 0.0
  %1153 = vmatpush2.msra.mxu0 0.0
  %1154 = vmatprep.subr.mxu0 0.0
  %1155 = vmatpush2.msra.mxu0 0.0
  %1156 = vmatprep.subr.mxu0 0.0
  %1157 = vmatpush2.msra.mxu0 0.0
  %1158 = vmatprep.subr.mxu0 0.0
  %1159 = vmatpush2.msra.mxu0 0.0
  %1160 = vmatprep.subr.mxu0 0.0
  %1161 = vmatpush2.msra.mxu0 0.0
  %1162 = vmatprep.mubr.f32.mxu0 0.0
  %v1163 = vand.u32 %v967, 4294901760
  %1164 = vmatmul.mubr.f32.gmra.mxu0 %v1163
  %v1165 = vpop.f32.mrf.mxu0
  %v1166 = vadd.f32 %v1050, %v1165
  %v1167 = vpop.f32.mrf.mxu0
  %1168 = vdwg.mxu0
  %1169 = vmatprep.subr.mxu0 0.0
  %1170 = vmatpush1.msra.mxu0 0.0
  %1171 = vmatprep.subr.mxu0 0.0
  %1172 = vmatpush1.msra.mxu0 0.0
  %1173 = vmatprep.subr.mxu0 0.0
  %1174 = vmatpush1.msra.mxu0 0.0
  %1175 = vmatprep.subr.mxu0 0.0
  %1176 = vmatpush1.msra.mxu0 0.0
  %1177 = vmatprep.subr.mxu0 0.0
  %1178 = vmatpush1.msra.mxu0 0.0
  %1179 = vmatprep.subr.mxu0 0.0
  %1180 = vmatpush1.msra.mxu0 0.0
  %1181 = vmatprep.subr.mxu0 0.0
  %1182 = vmatpush1.msra.mxu0 0.0
  %1183 = vmatprep.subr.mxu0 0.0
  %v1184 = vand.u32 %v964, 4294901760
  %v1185 = vsub.f32 %v964, %v1184
  %1186 = vmatpush1.msra.mxu0 %v1185
  %1187 = vmatprep.subr.mxu0 0.0
  %v1188 = vand.u32 %v963, 4294901760
  %v1189 = vsub.f32 %v963, %v1188
  %1190 = vmatpush1.msra.mxu0 %v1189
  %1191 = vmatprep.subr.mxu0 0.0
  %v1192 = vand.u32 %v962, 4294901760
  %v1193 = vsub.f32 %v962, %v1192
  %1194 = vmatpush1.msra.mxu0 %v1193
  %1195 = vmatprep.subr.mxu0 0.0
  %v1196 = vand.u32 %v961, 4294901760
  %v1197 = vsub.f32 %v961, %v1196
  %1198 = vmatpush1.msra.mxu0 %v1197
  %1199 = vmatprep.subr.mxu0 0.0
  %v1200 = vand.u32 %v960, 4294901760
  %v1201 = vsub.f32 %v960, %v1200
  %1202 = vmatpush1.msra.mxu0 %v1201
  %1203 = vmatprep.subr.mxu0 0.0
  %v1204 = vand.u32 %v959, 4294901760
  %v1205 = vsub.f32 %v959, %v1204
  %1206 = vmatpush1.msra.mxu0 %v1205
  %1207 = vmatprep.subr.mxu0 0.0
  %v1208 = vand.u32 %v958, 4294901760
  %v1209 = vsub.f32 %v958, %v1208
  %1210 = vmatpush1.msra.mxu0 %v1209
  %1211 = vmatprep.subr.mxu0 0.0
  %v1212 = vand.u32 %v957, 4294901760
  %v1213 = vsub.f32 %v957, %v1212
  %1214 = vmatpush1.msra.mxu0 %v1213
  %1215 = vmatprep.subr.mxu0 0.0
  %v1216 = vand.u32 %v956, 4294901760
  %v1217 = vsub.f32 %v956, %v1216
  %1218 = vmatpush1.msra.mxu0 %v1217
  %1219 = vmatprep.subr.mxu0 0.0
  %1220 = vmatpush2.msra.mxu0 0.0
  %1221 = vmatprep.subr.mxu0 0.0
  %1222 = vmatpush2.msra.mxu0 0.0
  %1223 = vmatprep.subr.mxu0 0.0
  %1224 = vmatpush2.msra.mxu0 0.0
  %1225 = vmatprep.subr.mxu0 0.0
  %1226 = vmatpush2.msra.mxu0 0.0
  %1227 = vmatprep.subr.mxu0 0.0
  %1228 = vmatpush2.msra.mxu0 0.0
  %1229 = vmatprep.subr.mxu0 0.0
  %1230 = vmatpush2.msra.mxu0 0.0
  %1231 = vmatprep.subr.mxu0 0.0
  %1232 = vmatpush2.msra.mxu0 0.0
  %1233 = vmatprep.subr.mxu0 0.0
  %1234 = vmatpush2.msra.mxu0 0.0
  %1235 = vmatprep.subr.mxu0 0.0
  %1236 = vmatpush2.msra.mxu0 0.0
  %1237 = vmatprep.subr.mxu0 0.0
  %1238 = vmatpush2.msra.mxu0 0.0
  %1239 = vmatprep.subr.mxu0 0.0
  %1240 = vmatpush2.msra.mxu0 0.0
  %1241 = vmatprep.subr.mxu0 0.0
  %1242 = vmatpush2.msra.mxu0 0.0
  %1243 = vmatprep.subr.mxu0 0.0
  %1244 = vmatpush2.msra.mxu0 0.0
  %1245 = vmatprep.subr.mxu0 0.0
  %1246 = vmatpush2.msra.mxu0 0.0
  %1247 = vmatprep.subr.mxu0 0.0
  %1248 = vmatpush2.msra.mxu0 0.0
  %1249 = vmatprep.subr.mxu0 0.0
  %1250 = vmatpush2.msra.mxu0 0.0
  %1251 = vmatprep.mubr.f32.mxu0 0.0
  %v1252 = vand.u32 %v967, 4294901760
  %v1253 = vsub.f32 %v967, %v1252
  %1254 = vmatmul.mubr.f32.gmra.mxu0 %v1253
  %v1255 = vpop.f32.mrf.mxu0
  %v1256 = vadd.f32 %v1166, %v1255
  %v1257 = vpop.f32.mrf.mxu0
  %1258 = vdwg.mxu0
  %1259 = vmatprep.subr.mxu0 0.0
  %1260 = vmatpush1.msra.mxu0 0.0
  %1261 = vmatprep.subr.mxu0 0.0
  %1262 = vmatpush1.msra.mxu0 0.0
  %1263 = vmatprep.subr.mxu0 0.0
  %1264 = vmatpush1.msra.mxu0 0.0
  %1265 = vmatprep.subr.mxu0 0.0
  %1266 = vmatpush1.msra.mxu0 0.0
  %1267 = vmatprep.subr.mxu0 0.0
  %1268 = vmatpush1.msra.mxu0 0.0
  %1269 = vmatprep.subr.mxu0 0.0
  %1270 = vmatpush1.msra.mxu0 0.0
  %1271 = vmatprep.subr.mxu0 0.0
  %1272 = vmatpush1.msra.mxu0 0.0
  %1273 = vmatprep.subr.mxu0 0.0
  %v1274 = vand.u32 %v964, 4294901760
  %1275 = vmatpush1.msra.mxu0 %v1274
  %1276 = vmatprep.subr.mxu0 0.0
  %v1277 = vand.u32 %v963, 4294901760
  %1278 = vmatpush1.msra.mxu0 %v1277
  %1279 = vmatprep.subr.mxu0 0.0
  %v1280 = vand.u32 %v962, 4294901760
  %1281 = vmatpush1.msra.mxu0 %v1280
  %1282 = vmatprep.subr.mxu0 0.0
  %v1283 = vand.u32 %v961, 4294901760
  %1284 = vmatpush1.msra.mxu0 %v1283
  %1285 = vmatprep.subr.mxu0 0.0
  %v1286 = vand.u32 %v960, 4294901760
  %1287 = vmatpush1.msra.mxu0 %v1286
  %1288 = vmatprep.subr.mxu0 0.0
  %v1289 = vand.u32 %v959, 4294901760
  %1290 = vmatpush1.msra.mxu0 %v1289
  %1291 = vmatprep.subr.mxu0 0.0
  %v1292 = vand.u32 %v958, 4294901760
  %1293 = vmatpush1.msra.mxu0 %v1292
  %1294 = vmatprep.subr.mxu0 0.0
  %v1295 = vand.u32 %v957, 4294901760
  %1296 = vmatpush1.msra.mxu0 %v1295
  %1297 = vmatprep.subr.mxu0 0.0
  %v1298 = vand.u32 %v956, 4294901760
  %1299 = vmatpush1.msra.mxu0 %v1298
  %1300 = vmatprep.subr.mxu0 0.0
  %1301 = vmatpush2.msra.mxu0 0.0
  %1302 = vmatprep.subr.mxu0 0.0
  %1303 = vmatpush2.msra.mxu0 0.0
  %1304 = vmatprep.subr.mxu0 0.0
  %1305 = vmatpush2.msra.mxu0 0.0
  %1306 = vmatprep.subr.mxu0 0.0
  %1307 = vmatpush2.msra.mxu0 0.0
  %1308 = vmatprep.subr.mxu0 0.0
  %1309 = vmatpush2.msra.mxu0 0.0
  %1310 = vmatprep.subr.mxu0 0.0
  %1311 = vmatpush2.msra.mxu0 0.0
  %1312 = vmatprep.subr.mxu0 0.0
  %1313 = vmatpush2.msra.mxu0 0.0
  %1314 = vmatprep.subr.mxu0 0.0
  %1315 = vmatpush2.msra.mxu0 0.0
  %1316 = vmatprep.subr.mxu0 0.0
  %1317 = vmatpush2.msra.mxu0 0.0
  %1318 = vmatprep.subr.mxu0 0.0
  %1319 = vmatpush2.msra.mxu0 0.0
  %1320 = vmatprep.subr.mxu0 0.0
  %1321 = vmatpush2.msra.mxu0 0.0
  %1322 = vmatprep.subr.mxu0 0.0
  %1323 = vmatpush2.msra.mxu0 0.0
  %1324 = vmatprep.subr.mxu0 0.0
  %1325 = vmatpush2.msra.mxu0 0.0
  %1326 = vmatprep.subr.mxu0 0.0
  %1327 = vmatpush2.msra.mxu0 0.0
  %1328 = vmatprep.subr.mxu0 0.0
  %1329 = vmatpush2.msra.mxu0 0.0
  %1330 = vmatprep.subr.mxu0 0.0
  %1331 = vmatpush2.msra.mxu0 0.0
  %1332 = vmatprep.mubr.f32.mxu0 0.0
  %v1333 = vand.u32 %v967, 4294901760
  %v1334 = vsub.f32 %v967, %v1333
  %v1335 = vand.u32 %v1334, 4294901760
  %1336 = vmatmul.mubr.f32.gmra.mxu0 %v1335
  %v1337 = vpop.f32.mrf.mxu0
  %v1338 = vadd.f32 %v1256, %v1337
  %v1339 = vpop.f32.mrf.mxu0
  %1340 = vdwg.mxu0
  %1341 = vmatprep.subr.mxu0 0.0
  %1342 = vmatpush1.msra.mxu0 0.0
  %1343 = vmatprep.subr.mxu0 0.0
  %1344 = vmatpush1.msra.mxu0 0.0
  %1345 = vmatprep.subr.mxu0 0.0
  %1346 = vmatpush1.msra.mxu0 0.0
  %1347 = vmatprep.subr.mxu0 0.0
  %1348 = vmatpush1.msra.mxu0 0.0
  %1349 = vmatprep.subr.mxu0 0.0
  %1350 = vmatpush1.msra.mxu0 0.0
  %1351 = vmatprep.subr.mxu0 0.0
  %1352 = vmatpush1.msra.mxu0 0.0
  %1353 = vmatprep.subr.mxu0 0.0
  %1354 = vmatpush1.msra.mxu0 0.0
  %1355 = vmatprep.subr.mxu0 0.0
  %v1356 = vand.u32 %v964, 4294901760
  %v1357 = vsub.f32 %v964, %v1356
  %v1358 = vand.u32 %v1357, 4294901760
  %1359 = vmatpush1.msra.mxu0 %v1358
  %1360 = vmatprep.subr.mxu0 0.0
  %v1361 = vand.u32 %v963, 4294901760
  %v1362 = vsub.f32 %v963, %v1361
  %v1363 = vand.u32 %v1362, 4294901760
  %1364 = vmatpush1.msra.mxu0 %v1363
  %1365 = vmatprep.subr.mxu0 0.0
  %v1366 = vand.u32 %v962, 4294901760
  %v1367 = vsub.f32 %v962, %v1366
  %v1368 = vand.u32 %v1367, 4294901760
  %1369 = vmatpush1.msra.mxu0 %v1368
  %1370 = vmatprep.subr.mxu0 0.0
  %v1371 = vand.u32 %v961, 4294901760
  %v1372 = vsub.f32 %v961, %v1371
  %v1373 = vand.u32 %v1372, 4294901760
  %1374 = vmatpush1.msra.mxu0 %v1373
  %1375 = vmatprep.subr.mxu0 0.0
  %v1376 = vand.u32 %v960, 4294901760
  %v1377 = vsub.f32 %v960, %v1376
  %v1378 = vand.u32 %v1377, 4294901760
  %1379 = vmatpush1.msra.mxu0 %v1378
  %1380 = vmatprep.subr.mxu0 0.0
  %v1381 = vand.u32 %v959, 4294901760
  %v1382 = vsub.f32 %v959, %v1381
  %v1383 = vand.u32 %v1382, 4294901760
  %1384 = vmatpush1.msra.mxu0 %v1383
  %1385 = vmatprep.subr.mxu0 0.0
  %v1386 = vand.u32 %v958, 4294901760
  %v1387 = vsub.f32 %v958, %v1386
  %v1388 = vand.u32 %v1387, 4294901760
  %1389 = vmatpush1.msra.mxu0 %v1388
  %1390 = vmatprep.subr.mxu0 0.0
  %v1391 = vand.u32 %v957, 4294901760
  %v1392 = vsub.f32 %v957, %v1391
  %v1393 = vand.u32 %v1392, 4294901760
  %1394 = vmatpush1.msra.mxu0 %v1393
  %1395 = vmatprep.subr.mxu0 0.0
  %v1396 = vand.u32 %v956, 4294901760
  %v1397 = vsub.f32 %v956, %v1396
  %v1398 = vand.u32 %v1397, 4294901760
  %1399 = vmatpush1.msra.mxu0 %v1398
  %1400 = vmatprep.subr.mxu0 0.0
  %1401 = vmatpush2.msra.mxu0 0.0
  %1402 = vmatprep.subr.mxu0 0.0
  %1403 = vmatpush2.msra.mxu0 0.0
  %1404 = vmatprep.subr.mxu0 0.0
  %1405 = vmatpush2.msra.mxu0 0.0
  %1406 = vmatprep.subr.mxu0 0.0
  %1407 = vmatpush2.msra.mxu0 0.0
  %1408 = vmatprep.subr.mxu0 0.0
  %1409 = vmatpush2.msra.mxu0 0.0
  %1410 = vmatprep.subr.mxu0 0.0
  %1411 = vmatpush2.msra.mxu0 0.0
  %1412 = vmatprep.subr.mxu0 0.0
  %1413 = vmatpush2.msra.mxu0 0.0
  %1414 = vmatprep.subr.mxu0 0.0
  %1415 = vmatpush2.msra.mxu0 0.0
  %1416 = vmatprep.subr.mxu0 0.0
  %1417 = vmatpush2.msra.mxu0 0.0
  %1418 = vmatprep.subr.mxu0 0.0
  %1419 = vmatpush2.msra.mxu0 0.0
  %1420 = vmatprep.subr.mxu0 0.0
  %1421 = vmatpush2.msra.mxu0 0.0
  %1422 = vmatprep.subr.mxu0 0.0
  %1423 = vmatpush2.msra.mxu0 0.0
  %1424 = vmatprep.subr.mxu0 0.0
  %1425 = vmatpush2.msra.mxu0 0.0
  %1426 = vmatprep.subr.mxu0 0.0
  %1427 = vmatpush2.msra.mxu0 0.0
  %1428 = vmatprep.subr.mxu0 0.0
  %1429 = vmatpush2.msra.mxu0 0.0
  %1430 = vmatprep.subr.mxu0 0.0
  %1431 = vmatpush2.msra.mxu0 0.0
  %1432 = vmatprep.mubr.f32.mxu0 0.0
  %v1433 = vand.u32 %v967, 4294901760
  %1434 = vmatmul.mubr.f32.gmra.mxu0 %v1433
  %v1435 = vpop.f32.mrf.mxu0
  %v1436 = vadd.f32 %v1338, %v1435
  %v1437 = vpop.f32.mrf.mxu0
  %1438 = vdwg.mxu0
  %1439 = vmatprep.subr.mxu0 0.0
  %1440 = vmatpush1.msra.mxu0 0.0
  %1441 = vmatprep.subr.mxu0 0.0
  %1442 = vmatpush1.msra.mxu0 0.0
  %1443 = vmatprep.subr.mxu0 0.0
  %1444 = vmatpush1.msra.mxu0 0.0
  %1445 = vmatprep.subr.mxu0 0.0
  %1446 = vmatpush1.msra.mxu0 0.0
  %1447 = vmatprep.subr.mxu0 0.0
  %1448 = vmatpush1.msra.mxu0 0.0
  %1449 = vmatprep.subr.mxu0 0.0
  %1450 = vmatpush1.msra.mxu0 0.0
  %1451 = vmatprep.subr.mxu0 0.0
  %1452 = vmatpush1.msra.mxu0 0.0
  %1453 = vmatprep.subr.mxu0 0.0
  %v1454 = vand.u32 %v964, 4294901760
  %1455 = vmatpush1.msra.mxu0 %v1454
  %1456 = vmatprep.subr.mxu0 0.0
  %v1457 = vand.u32 %v963, 4294901760
  %1458 = vmatpush1.msra.mxu0 %v1457
  %1459 = vmatprep.subr.mxu0 0.0
  %v1460 = vand.u32 %v962, 4294901760
  %1461 = vmatpush1.msra.mxu0 %v1460
  %1462 = vmatprep.subr.mxu0 0.0
  %v1463 = vand.u32 %v961, 4294901760
  %1464 = vmatpush1.msra.mxu0 %v1463
  %1465 = vmatprep.subr.mxu0 0.0
  %v1466 = vand.u32 %v960, 4294901760
  %1467 = vmatpush1.msra.mxu0 %v1466
  %1468 = vmatprep.subr.mxu0 0.0
  %v1469 = vand.u32 %v959, 4294901760
  %1470 = vmatpush1.msra.mxu0 %v1469
  %1471 = vmatprep.subr.mxu0 0.0
  %v1472 = vand.u32 %v958, 4294901760
  %1473 = vmatpush1.msra.mxu0 %v1472
  %1474 = vmatprep.subr.mxu0 0.0
  %v1475 = vand.u32 %v957, 4294901760
  %1476 = vmatpush1.msra.mxu0 %v1475
  %1477 = vmatprep.subr.mxu0 0.0
  %v1478 = vand.u32 %v956, 4294901760
  %1479 = vmatpush1.msra.mxu0 %v1478
  %1480 = vmatprep.subr.mxu0 0.0
  %1481 = vmatpush2.msra.mxu0 0.0
  %1482 = vmatprep.subr.mxu0 0.0
  %1483 = vmatpush2.msra.mxu0 0.0
  %1484 = vmatprep.subr.mxu0 0.0
  %1485 = vmatpush2.msra.mxu0 0.0
  %1486 = vmatprep.subr.mxu0 0.0
  %1487 = vmatpush2.msra.mxu0 0.0
  %1488 = vmatprep.subr.mxu0 0.0
  %1489 = vmatpush2.msra.mxu0 0.0
  %1490 = vmatprep.subr.mxu0 0.0
  %1491 = vmatpush2.msra.mxu0 0.0
  %1492 = vmatprep.subr.mxu0 0.0
  %1493 = vmatpush2.msra.mxu0 0.0
  %1494 = vmatprep.subr.mxu0 0.0
  %1495 = vmatpush2.msra.mxu0 0.0
  %1496 = vmatprep.subr.mxu0 0.0
  %1497 = vmatpush2.msra.mxu0 0.0
  %1498 = vmatprep.subr.mxu0 0.0
  %1499 = vmatpush2.msra.mxu0 0.0
  %1500 = vmatprep.subr.mxu0 0.0
  %1501 = vmatpush2.msra.mxu0 0.0
  %1502 = vmatprep.subr.mxu0 0.0
  %1503 = vmatpush2.msra.mxu0 0.0
  %1504 = vmatprep.subr.mxu0 0.0
  %1505 = vmatpush2.msra.mxu0 0.0
  %1506 = vmatprep.subr.mxu0 0.0
  %1507 = vmatpush2.msra.mxu0 0.0
  %1508 = vmatprep.subr.mxu0 0.0
  %1509 = vmatpush2.msra.mxu0 0.0
  %1510 = vmatprep.subr.mxu0 0.0
  %1511 = vmatpush2.msra.mxu0 0.0
  %1512 = vmatprep.mubr.f32.mxu0 0.0
  %v1513 = vand.u32 %v967, 4294901760
  %1514 = vmatmul.mubr.f32.gmra.mxu0 %v1513
  %v1515 = vpop.f32.mrf.mxu0
  %v1516 = vadd.f32 %v1436, %v1515
  %v1517 = vpop.f32.mrf.mxu0
  %1518 = vdwg.mxu0
  %v1519 = vsub.f32 %v485, %v1516
  %1521 = vrot.lane.b32.xlu0 %v1516, 125
  %v1522 = vpop.permute.xlu0 %1521
  %v1524 = vmul.f32 %v1519, %v1522
  %v1525 = vsub.f32 1.0, %v1524
  %v1526 = vmul.f32 %v1524, %v1525
  %1528 = vrot.lane.b32.xlu0 %v1524, 12
  %v1529 = vpop.permute.xlu0 %1528
  %v1531 = vmul.f32 %v1516, %v1529
  %v1532 = vmul.f32 %v1531, %v1529
  %1534 = vrot.lane.b32.xlu0 %v1526, 15
  %v1535 = vpop.permute.xlu0 %1534
  %v1537 = vmul.f32 %v1516, %v1535
  %1539 = vrot.lane.b32.xlu0 %v1537, 125
  %v1540 = vpop.permute.xlu0 %1539
  %v1542 = vadd.f32 %v1532, %v1540
  %1544 = vrot.lane.b32.xlu0 %v1542, 125
  %v1545 = vpop.permute.xlu0 %1544
  %v1547 = vmul.f32 %v1516, %v1545
  %v1548 = vadd.f32 %v1516, %v1522
  %v1549 = vmul.f32 %v1516, 2.0
  %1551 = vrot.lane.b32.xlu0 %v1549, 3
  %v1552 = vpop.permute.xlu0 %1551
  %v1554 = vsub.f32 %v1548, %v1552
  %v1555 = vmul.f32 %v1554, %v1535
  %1557 = vrot.lane.b32.xlu0 %v1555, 125
  %v1558 = vpop.permute.xlu0 %1557
  %v1560 = vadd.f32 %v1516, %v1558
  %v1561 = vrcp.pop %v1560
  %v1562 = vmul.f32 1.0, %v1561
  %1564 = vrot.lane.b32.xlu0 %v1562, 125
  %v1565 = vpop.permute.xlu0 %1564
  %v1567 = vmul.f32 %v1547, %v1565
  %1569 = vrot.lane.b32.xlu0 %v1567, 125
  %v1570 = vpop.permute.xlu0 %1569
  %v1572 = vadd.f32 %v1516, %v1570
  %v1573 = vmul.f32 %v1516, %v1516
  %1574 = vrot.lane.b32.xlu0 %v1524, 18
  %v1575 = vpop.permute.xlu0 %1574
  %v1577 = vmul.f32 %v1516, %v1575
  %v1578 = vmul.f32 %v1577, %v1575
  %1579 = vrot.lane.b32.xlu0 %v1526, 12
  %v1580 = vpop.permute.xlu0 %1579
  %v1582 = vmul.f32 %v1549, %v1580
  %1584 = vrot.lane.b32.xlu0 %v1582, 6
  %v1585 = vpop.permute.xlu0 %1584
  %v1587 = vadd.f32 %v1578, %v1585
  %1589 = vrot.lane.b32.xlu0 %v1525, 15
  %v1590 = vpop.permute.xlu0 %1589
  %v1592 = vmul.f32 %v1516, %v1590
  %v1593 = vmul.f32 %v1592, %v1590
  %1595 = vrot.lane.b32.xlu0 %v1593, 3
  %v1596 = vpop.permute.xlu0 %1595
  %v1598 = vadd.f32 %v1587, %v1596
  %1600 = vrot.lane.b32.xlu0 %v1598, 122
  %v1601 = vpop.permute.xlu0 %1600
  %v1603 = vmul.f32 %v1573, %v1601
  %v1604 = vmul.f32 %v1603, %v1562
  %v1605 = vmul.f32 %v1604, %v1562
  %v1606 = vlog2.pop %v1605
  %v1607 = vmul.f32 %v1606, 0.6931472
  %1609 = vrot.lane.b32.xlu0 %v1572, 122
  %v1610 = vpop.permute.xlu0 %1609
  %v1612 = vsel %vm483, %v1610, %v478
  %1614 = vrot.lane.b32.xlu0 %v1607, 116
  %v1615 = vpop.permute.xlu0 %1614
  %v1617 = vsel %vm483, %v1615, 0.0
  %v1618 = vsub.f32 %v1612, %v478
  %v1619 = vld [vmem:[%s2] sm:$0x7]
  %v1621 = vsel %vm487, %v1618, 0
  %v1624 = vsel %vm491, %v1619, 0
  %1626 = vmatprep.subr.mxu0 0.0
  %1627 = vmatpush1.msra.mxu0 0.0
  %1628 = vmatprep.subr.mxu0 0.0
  %1629 = vmatpush1.msra.mxu0 0.0
  %1630 = vmatprep.subr.mxu0 0.0
  %1631 = vmatpush1.msra.mxu0 0.0
  %1632 = vmatprep.subr.mxu0 0.0
  %1633 = vmatpush1.msra.mxu0 0.0
  %1634 = vmatprep.subr.mxu0 0.0
  %1635 = vmatpush1.msra.mxu0 0.0
  %1636 = vmatprep.subr.mxu0 0.0
  %1637 = vmatpush1.msra.mxu0 0.0
  %1638 = vmatprep.subr.mxu0 0.0
  %1639 = vmatpush1.msra.mxu0 0.0
  %1640 = vmatprep.subr.mxu0 0.0
  %1641 = vmatpush1.msra.mxu0 0.0
  %1642 = vmatprep.subr.mxu0 0.0
  %1643 = vmatpush1.msra.mxu0 0.0
  %1644 = vmatprep.subr.mxu0 0.0
  %1645 = vmatpush1.msra.mxu0 0.0
  %1646 = vmatprep.subr.mxu0 0.0
  %1647 = vmatpush1.msra.mxu0 0.0
  %1648 = vmatprep.subr.mxu0 0.0
  %1649 = vmatpush1.msra.mxu0 0.0
  %1650 = vmatprep.subr.mxu0 0.0
  %1651 = vmatpush1.msra.mxu0 0.0
  %1652 = vmatprep.subr.mxu0 0.0
  %1653 = vmatpush1.msra.mxu0 0.0
  %1654 = vmatprep.subr.mxu0 0.0
  %1655 = vmatpush1.msra.mxu0 0.0
  %1656 = vmatprep.subr.mxu0 0.0
  %v1657 = vand.u32 %v1624, 4294901760
  %1658 = vmatpush1.msra.mxu0 %v1657
  %1659 = vmatprep.subr.mxu0 0.0
  %1660 = vmatpush2.msra.mxu0 0.0
  %1661 = vmatprep.subr.mxu0 0.0
  %1662 = vmatpush2.msra.mxu0 0.0
  %1663 = vmatprep.subr.mxu0 0.0
  %1664 = vmatpush2.msra.mxu0 0.0
  %1665 = vmatprep.subr.mxu0 0.0
  %1666 = vmatpush2.msra.mxu0 0.0
  %1667 = vmatprep.subr.mxu0 0.0
  %1668 = vmatpush2.msra.mxu0 0.0
  %1669 = vmatprep.subr.mxu0 0.0
  %1670 = vmatpush2.msra.mxu0 0.0
  %1671 = vmatprep.subr.mxu0 0.0
  %1672 = vmatpush2.msra.mxu0 0.0
  %1673 = vmatprep.subr.mxu0 0.0
  %1674 = vmatpush2.msra.mxu0 0.0
  %1675 = vmatprep.subr.mxu0 0.0
  %1676 = vmatpush2.msra.mxu0 0.0
  %1677 = vmatprep.subr.mxu0 0.0
  %1678 = vmatpush2.msra.mxu0 0.0
  %1679 = vmatprep.subr.mxu0 0.0
  %1680 = vmatpush2.msra.mxu0 0.0
  %1681 = vmatprep.subr.mxu0 0.0
  %1682 = vmatpush2.msra.mxu0 0.0
  %1683 = vmatprep.subr.mxu0 0.0
  %1684 = vmatpush2.msra.mxu0 0.0
  %1685 = vmatprep.subr.mxu0 0.0
  %1686 = vmatpush2.msra.mxu0 0.0
  %1687 = vmatprep.subr.mxu0 0.0
  %1688 = vmatpush2.msra.mxu0 0.0
  %1689 = vmatprep.subr.mxu0 0.0
  %1690 = vmatpush2.msra.mxu0 0.0
  %1691 = vmatprep.mubr.f32.mxu0 0.0
  %v1692 = vand.u32 %v1621, 4294901760
  %v1693 = vsub.f32 %v1621, %v1692
  %v1694 = vand.u32 %v1693, 4294901760
  %v1695 = vsub.f32 %v1693, %v1694
  %v1696 = vand.u32 %v1695, 4294901760
  %1697 = vmatmul.mubr.f32.gmra.mxu0 %v1696
  %v1698 = vpop.f32.mrf.mxu0
  %v1699 = vadd.f32 0.0, %v1698
  %v1700 = vpop.f32.mrf.mxu0
  %1701 = vdwg.mxu0
  %1702 = vmatprep.subr.mxu0 0.0
  %1703 = vmatpush1.msra.mxu0 0.0
  %1704 = vmatprep.subr.mxu0 0.0
  %1705 = vmatpush1.msra.mxu0 0.0
  %1706 = vmatprep.subr.mxu0 0.0
  %1707 = vmatpush1.msra.mxu0 0.0
  %1708 = vmatprep.subr.mxu0 0.0
  %1709 = vmatpush1.msra.mxu0 0.0
  %1710 = vmatprep.subr.mxu0 0.0
  %1711 = vmatpush1.msra.mxu0 0.0
  %1712 = vmatprep.subr.mxu0 0.0
  %1713 = vmatpush1.msra.mxu0 0.0
  %1714 = vmatprep.subr.mxu0 0.0
  %1715 = vmatpush1.msra.mxu0 0.0
  %1716 = vmatprep.subr.mxu0 0.0
  %1717 = vmatpush1.msra.mxu0 0.0
  %1718 = vmatprep.subr.mxu0 0.0
  %1719 = vmatpush1.msra.mxu0 0.0
  %1720 = vmatprep.subr.mxu0 0.0
  %1721 = vmatpush1.msra.mxu0 0.0
  %1722 = vmatprep.subr.mxu0 0.0
  %1723 = vmatpush1.msra.mxu0 0.0
  %1724 = vmatprep.subr.mxu0 0.0
  %1725 = vmatpush1.msra.mxu0 0.0
  %1726 = vmatprep.subr.mxu0 0.0
  %1727 = vmatpush1.msra.mxu0 0.0
  %1728 = vmatprep.subr.mxu0 0.0
  %1729 = vmatpush1.msra.mxu0 0.0
  %1730 = vmatprep.subr.mxu0 0.0
  %1731 = vmatpush1.msra.mxu0 0.0
  %1732 = vmatprep.subr.mxu0 0.0
  %v1733 = vand.u32 %v1624, 4294901760
  %v1734 = vsub.f32 %v1624, %v1733
  %v1735 = vand.u32 %v1734, 4294901760
  %v1736 = vsub.f32 %v1734, %v1735
  %v1737 = vand.u32 %v1736, 4294901760
  %1738 = vmatpush1.msra.mxu0 %v1737
  %1739 = vmatprep.subr.mxu0 0.0
  %1740 = vmatpush2.msra.mxu0 0.0
  %1741 = vmatprep.subr.mxu0 0.0
  %1742 = vmatpush2.msra.mxu0 0.0
  %1743 = vmatprep.subr.mxu0 0.0
  %1744 = vmatpush2.msra.mxu0 0.0
  %1745 = vmatprep.subr.mxu0 0.0
  %1746 = vmatpush2.msra.mxu0 0.0
  %1747 = vmatprep.subr.mxu0 0.0
  %1748 = vmatpush2.msra.mxu0 0.0
  %1749 = vmatprep.subr.mxu0 0.0
  %1750 = vmatpush2.msra.mxu0 0.0
  %1751 = vmatprep.subr.mxu0 0.0
  %1752 = vmatpush2.msra.mxu0 0.0
  %1753 = vmatprep.subr.mxu0 0.0
  %1754 = vmatpush2.msra.mxu0 0.0
  %1755 = vmatprep.subr.mxu0 0.0
  %1756 = vmatpush2.msra.mxu0 0.0
  %1757 = vmatprep.subr.mxu0 0.0
  %1758 = vmatpush2.msra.mxu0 0.0
  %1759 = vmatprep.subr.mxu0 0.0
  %1760 = vmatpush2.msra.mxu0 0.0
  %1761 = vmatprep.subr.mxu0 0.0
  %1762 = vmatpush2.msra.mxu0 0.0
  %1763 = vmatprep.subr.mxu0 0.0
  %1764 = vmatpush2.msra.mxu0 0.0
  %1765 = vmatprep.subr.mxu0 0.0
  %1766 = vmatpush2.msra.mxu0 0.0
  %1767 = vmatprep.subr.mxu0 0.0
  %1768 = vmatpush2.msra.mxu0 0.0
  %1769 = vmatprep.subr.mxu0 0.0
  %1770 = vmatpush2.msra.mxu0 0.0
  %1771 = vmatprep.mubr.f32.mxu0 0.0
  %v1772 = vand.u32 %v1621, 4294901760
  %1773 = vmatmul.mubr.f32.gmra.mxu0 %v1772
  %v1774 = vpop.f32.mrf.mxu0
  %v1775 = vadd.f32 %v1699, %v1774
  %v1776 = vpop.f32.mrf.mxu0
  %1777 = vdwg.mxu0
  %1778 = vmatprep.subr.mxu0 0.0
  %1779 = vmatpush1.msra.mxu0 0.0
  %1780 = vmatprep.subr.mxu0 0.0
  %1781 = vmatpush1.msra.mxu0 0.0
  %1782 = vmatprep.subr.mxu0 0.0
  %1783 = vmatpush1.msra.mxu0 0.0
  %1784 = vmatprep.subr.mxu0 0.0
  %1785 = vmatpush1.msra.mxu0 0.0
  %1786 = vmatprep.subr.mxu0 0.0
  %1787 = vmatpush1.msra.mxu0 0.0
  %1788 = vmatprep.subr.mxu0 0.0
  %1789 = vmatpush1.msra.mxu0 0.0
  %1790 = vmatprep.subr.mxu0 0.0
  %1791 = vmatpush1.msra.mxu0 0.0
  %1792 = vmatprep.subr.mxu0 0.0
  %1793 = vmatpush1.msra.mxu0 0.0
  %1794 = vmatprep.subr.mxu0 0.0
  %1795 = vmatpush1.msra.mxu0 0.0
  %1796 = vmatprep.subr.mxu0 0.0
  %1797 = vmatpush1.msra.mxu0 0.0
  %1798 = vmatprep.subr.mxu0 0.0
  %1799 = vmatpush1.msra.mxu0 0.0
  %1800 = vmatprep.subr.mxu0 0.0
  %1801 = vmatpush1.msra.mxu0 0.0
  %1802 = vmatprep.subr.mxu0 0.0
  %1803 = vmatpush1.msra.mxu0 0.0
  %1804 = vmatprep.subr.mxu0 0.0
  %1805 = vmatpush1.msra.mxu0 0.0
  %1806 = vmatprep.subr.mxu0 0.0
  %1807 = vmatpush1.msra.mxu0 0.0
  %1808 = vmatprep.subr.mxu0 0.0
  %v1809 = vand.u32 %v1624, 4294901760
  %v1810 = vsub.f32 %v1624, %v1809
  %1811 = vmatpush1.msra.mxu0 %v1810
  %1812 = vmatprep.subr.mxu0 0.0
  %1813 = vmatpush2.msra.mxu0 0.0
  %1814 = vmatprep.subr.mxu0 0.0
  %1815 = vmatpush2.msra.mxu0 0.0
  %1816 = vmatprep.subr.mxu0 0.0
  %1817 = vmatpush2.msra.mxu0 0.0
  %1818 = vmatprep.subr.mxu0 0.0
  %1819 = vmatpush2.msra.mxu0 0.0
  %1820 = vmatprep.subr.mxu0 0.0
  %1821 = vmatpush2.msra.mxu0 0.0
  %1822 = vmatprep.subr.mxu0 0.0
  %1823 = vmatpush2.msra.mxu0 0.0
  %1824 = vmatprep.subr.mxu0 0.0
  %1825 = vmatpush2.msra.mxu0 0.0
  %1826 = vmatprep.subr.mxu0 0.0
  %1827 = vmatpush2.msra.mxu0 0.0
  %1828 = vmatprep.subr.mxu0 0.0
  %1829 = vmatpush2.msra.mxu0 0.0
  %1830 = vmatprep.subr.mxu0 0.0
  %1831 = vmatpush2.msra.mxu0 0.0
  %1832 = vmatprep.subr.mxu0 0.0
  %1833 = vmatpush2.msra.mxu0 0.0
  %1834 = vmatprep.subr.mxu0 0.0
  %1835 = vmatpush2.msra.mxu0 0.0
  %1836 = vmatprep.subr.mxu0 0.0
  %1837 = vmatpush2.msra.mxu0 0.0
  %1838 = vmatprep.subr.mxu0 0.0
  %1839 = vmatpush2.msra.mxu0 0.0
  %1840 = vmatprep.subr.mxu0 0.0
  %1841 = vmatpush2.msra.mxu0 0.0
  %1842 = vmatprep.subr.mxu0 0.0
  %1843 = vmatpush2.msra.mxu0 0.0
  %1844 = vmatprep.mubr.f32.mxu0 0.0
  %v1845 = vand.u32 %v1621, 4294901760
  %v1846 = vsub.f32 %v1621, %v1845
  %1847 = vmatmul.mubr.f32.gmra.mxu0 %v1846
  %v1848 = vpop.f32.mrf.mxu0
  %v1849 = vadd.f32 %v1775, %v1848
  %v1850 = vpop.f32.mrf.mxu0
  %1851 = vdwg.mxu0
  %1852 = vmatprep.subr.mxu0 0.0
  %1853 = vmatpush1.msra.mxu0 0.0
  %1854 = vmatprep.subr.mxu0 0.0
  %1855 = vmatpush1.msra.mxu0 0.0
  %1856 = vmatprep.subr.mxu0 0.0
  %1857 = vmatpush1.msra.mxu0 0.0
  %1858 = vmatprep.subr.mxu0 0.0
  %1859 = vmatpush1.msra.mxu0 0.0
  %1860 = vmatprep.subr.mxu0 0.0
  %1861 = vmatpush1.msra.mxu0 0.0
  %1862 = vmatprep.subr.mxu0 0.0
  %1863 = vmatpush1.msra.mxu0 0.0
  %1864 = vmatprep.subr.mxu0 0.0
  %1865 = vmatpush1.msra.mxu0 0.0
  %1866 = vmatprep.subr.mxu0 0.0
  %1867 = vmatpush1.msra.mxu0 0.0
  %1868 = vmatprep.subr.mxu0 0.0
  %1869 = vmatpush1.msra.mxu0 0.0
  %1870 = vmatprep.subr.mxu0 0.0
  %1871 = vmatpush1.msra.mxu0 0.0
  %1872 = vmatprep.subr.mxu0 0.0
  %1873 = vmatpush1.msra.mxu0 0.0
  %1874 = vmatprep.subr.mxu0 0.0
  %1875 = vmatpush1.msra.mxu0 0.0
  %1876 = vmatprep.subr.mxu0 0.0
  %1877 = vmatpush1.msra.mxu0 0.0
  %1878 = vmatprep.subr.mxu0 0.0
  %1879 = vmatpush1.msra.mxu0 0.0
  %1880 = vmatprep.subr.mxu0 0.0
  %1881 = vmatpush1.msra.mxu0 0.0
  %1882 = vmatprep.subr.mxu0 0.0
  %v1883 = vand.u32 %v1624, 4294901760
  %1884 = vmatpush1.msra.mxu0 %v1883
  %1885 = vmatprep.subr.mxu0 0.0
  %1886 = vmatpush2.msra.mxu0 0.0
  %1887 = vmatprep.subr.mxu0 0.0
  %1888 = vmatpush2.msra.mxu0 0.0
  %1889 = vmatprep.subr.mxu0 0.0
  %1890 = vmatpush2.msra.mxu0 0.0
  %1891 = vmatprep.subr.mxu0 0.0
  %1892 = vmatpush2.msra.mxu0 0.0
  %1893 = vmatprep.subr.mxu0 0.0
  %1894 = vmatpush2.msra.mxu0 0.0
  %1895 = vmatprep.subr.mxu0 0.0
  %1896 = vmatpush2.msra.mxu0 0.0
  %1897 = vmatprep.subr.mxu0 0.0
  %1898 = vmatpush2.msra.mxu0 0.0
  %1899 = vmatprep.subr.mxu0 0.0
  %1900 = vmatpush2.msra.mxu0 0.0
  %1901 = vmatprep.subr.mxu0 0.0
  %1902 = vmatpush2.msra.mxu0 0.0
  %1903 = vmatprep.subr.mxu0 0.0
  %1904 = vmatpush2.msra.mxu0 0.0
  %1905 = vmatprep.subr.mxu0 0.0
  %1906 = vmatpush2.msra.mxu0 0.0
  %1907 = vmatprep.subr.mxu0 0.0
  %1908 = vmatpush2.msra.mxu0 0.0
  %1909 = vmatprep.subr.mxu0 0.0
  %1910 = vmatpush2.msra.mxu0 0.0
  %1911 = vmatprep.subr.mxu0 0.0
  %1912 = vmatpush2.msra.mxu0 0.0
  %1913 = vmatprep.subr.mxu0 0.0
  %1914 = vmatpush2.msra.mxu0 0.0
  %1915 = vmatprep.subr.mxu0 0.0
  %1916 = vmatpush2.msra.mxu0 0.0
  %1917 = vmatprep.mubr.f32.mxu0 0.0
  %v1918 = vand.u32 %v1621, 4294901760
  %v1919 = vsub.f32 %v1621, %v1918
  %v1920 = vand.u32 %v1919, 4294901760
  %1921 = vmatmul.mubr.f32.gmra.mxu0 %v1920
  %v1922 = vpop.f32.mrf.mxu0
  %v1923 = vadd.f32 %v1849, %v1922
  %v1924 = vpop.f32.mrf.mxu0
  %1925 = vdwg.mxu0
  %1926 = vmatprep.subr.mxu0 0.0
  %1927 = vmatpush1.msra.mxu0 0.0
  %1928 = vmatprep.subr.mxu0 0.0
  %1929 = vmatpush1.msra.mxu0 0.0
  %1930 = vmatprep.subr.mxu0 0.0
  %1931 = vmatpush1.msra.mxu0 0.0
  %1932 = vmatprep.subr.mxu0 0.0
  %1933 = vmatpush1.msra.mxu0 0.0
  %1934 = vmatprep.subr.mxu0 0.0
  %1935 = vmatpush1.msra.mxu0 0.0
  %1936 = vmatprep.subr.mxu0 0.0
  %1937 = vmatpush1.msra.mxu0 0.0
  %1938 = vmatprep.subr.mxu0 0.0
  %1939 = vmatpush1.msra.mxu0 0.0
  %1940 = vmatprep.subr.mxu0 0.0
  %1941 = vmatpush1.msra.mxu0 0.0
  %1942 = vmatprep.subr.mxu0 0.0
  %1943 = vmatpush1.msra.mxu0 0.0
  %1944 = vmatprep.subr.mxu0 0.0
  %1945 = vmatpush1.msra.mxu0 0.0
  %1946 = vmatprep.subr.mxu0 0.0
  %1947 = vmatpush1.msra.mxu0 0.0
  %1948 = vmatprep.subr.mxu0 0.0
  %1949 = vmatpush1.msra.mxu0 0.0
  %1950 = vmatprep.subr.mxu0 0.0
  %1951 = vmatpush1.msra.mxu0 0.0
  %1952 = vmatprep.subr.mxu0 0.0
  %1953 = vmatpush1.msra.mxu0 0.0
  %1954 = vmatprep.subr.mxu0 0.0
  %1955 = vmatpush1.msra.mxu0 0.0
  %1956 = vmatprep.subr.mxu0 0.0
  %v1957 = vand.u32 %v1624, 4294901760
  %v1958 = vsub.f32 %v1624, %v1957
  %v1959 = vand.u32 %v1958, 4294901760
  %1960 = vmatpush1.msra.mxu0 %v1959
  %1961 = vmatprep.subr.mxu0 0.0
  %1962 = vmatpush2.msra.mxu0 0.0
  %1963 = vmatprep.subr.mxu0 0.0
  %1964 = vmatpush2.msra.mxu0 0.0
  %1965 = vmatprep.subr.mxu0 0.0
  %1966 = vmatpush2.msra.mxu0 0.0
  %1967 = vmatprep.subr.mxu0 0.0
  %1968 = vmatpush2.msra.mxu0 0.0
  %1969 = vmatprep.subr.mxu0 0.0
  %1970 = vmatpush2.msra.mxu0 0.0
  %1971 = vmatprep.subr.mxu0 0.0
  %1972 = vmatpush2.msra.mxu0 0.0
  %1973 = vmatprep.subr.mxu0 0.0
  %1974 = vmatpush2.msra.mxu0 0.0
  %1975 = vmatprep.subr.mxu0 0.0
  %1976 = vmatpush2.msra.mxu0 0.0
  %1977 = vmatprep.subr.mxu0 0.0
  %1978 = vmatpush2.msra.mxu0 0.0
  %1979 = vmatprep.subr.mxu0 0.0
  %1980 = vmatpush2.msra.mxu0 0.0
  %1981 = vmatprep.subr.mxu0 0.0
  %1982 = vmatpush2.msra.mxu0 0.0
  %1983 = vmatprep.subr.mxu0 0.0
  %1984 = vmatpush2.msra.mxu0 0.0
  %1985 = vmatprep.subr.mxu0 0.0
  %1986 = vmatpush2.msra.mxu0 0.0
  %1987 = vmatprep.subr.mxu0 0.0
  %1988 = vmatpush2.msra.mxu0 0.0
  %1989 = vmatprep.subr.mxu0 0.0
  %1990 = vmatpush2.msra.mxu0 0.0
  %1991 = vmatprep.subr.mxu0 0.0
  %1992 = vmatpush2.msra.mxu0 0.0
  %1993 = vmatprep.mubr.f32.mxu0 0.0
  %v1994 = vand.u32 %v1621, 4294901760
  %1995 = vmatmul.mubr.f32.gmra.mxu0 %v1994
  %v1996 = vpop.f32.mrf.mxu0
  %v1997 = vadd.f32 %v1923, %v1996
  %v1998 = vpop.f32.mrf.mxu0
  %1999 = vdwg.mxu0
  %2000 = vmatprep.subr.mxu0 0.0
  %2001 = vmatpush1.msra.mxu0 0.0
  %2002 = vmatprep.subr.mxu0 0.0
  %2003 = vmatpush1.msra.mxu0 0.0
  %2004 = vmatprep.subr.mxu0 0.0
  %2005 = vmatpush1.msra.mxu0 0.0
  %2006 = vmatprep.subr.mxu0 0.0
  %2007 = vmatpush1.msra.mxu0 0.0
  %2008 = vmatprep.subr.mxu0 0.0
  %2009 = vmatpush1.msra.mxu0 0.0
  %2010 = vmatprep.subr.mxu0 0.0
  %2011 = vmatpush1.msra.mxu0 0.0
  %2012 = vmatprep.subr.mxu0 0.0
  %2013 = vmatpush1.msra.mxu0 0.0
  %2014 = vmatprep.subr.mxu0 0.0
  %2015 = vmatpush1.msra.mxu0 0.0
  %2016 = vmatprep.subr.mxu0 0.0
  %2017 = vmatpush1.msra.mxu0 0.0
  %2018 = vmatprep.subr.mxu0 0.0
  %2019 = vmatpush1.msra.mxu0 0.0
  %2020 = vmatprep.subr.mxu0 0.0
  %2021 = vmatpush1.msra.mxu0 0.0
  %2022 = vmatprep.subr.mxu0 0.0
  %2023 = vmatpush1.msra.mxu0 0.0
  %2024 = vmatprep.subr.mxu0 0.0
  %2025 = vmatpush1.msra.mxu0 0.0
  %2026 = vmatprep.subr.mxu0 0.0
  %2027 = vmatpush1.msra.mxu0 0.0
  %2028 = vmatprep.subr.mxu0 0.0
  %2029 = vmatpush1.msra.mxu0 0.0
  %2030 = vmatprep.subr.mxu0 0.0
  %v2031 = vand.u32 %v1624, 4294901760
  %2032 = vmatpush1.msra.mxu0 %v2031
  %2033 = vmatprep.subr.mxu0 0.0
  %2034 = vmatpush2.msra.mxu0 0.0
  %2035 = vmatprep.subr.mxu0 0.0
  %2036 = vmatpush2.msra.mxu0 0.0
  %2037 = vmatprep.subr.mxu0 0.0
  %2038 = vmatpush2.msra.mxu0 0.0
  %2039 = vmatprep.subr.mxu0 0.0
  %2040 = vmatpush2.msra.mxu0 0.0
  %2041 = vmatprep.subr.mxu0 0.0
  %2042 = vmatpush2.msra.mxu0 0.0
  %2043 = vmatprep.subr.mxu0 0.0
  %2044 = vmatpush2.msra.mxu0 0.0
  %2045 = vmatprep.subr.mxu0 0.0
  %2046 = vmatpush2.msra.mxu0 0.0
  %2047 = vmatprep.subr.mxu0 0.0
  %2048 = vmatpush2.msra.mxu0 0.0
  %2049 = vmatprep.subr.mxu0 0.0
  %2050 = vmatpush2.msra.mxu0 0.0
  %2051 = vmatprep.subr.mxu0 0.0
  %2052 = vmatpush2.msra.mxu0 0.0
  %2053 = vmatprep.subr.mxu0 0.0
  %2054 = vmatpush2.msra.mxu0 0.0
  %2055 = vmatprep.subr.mxu0 0.0
  %2056 = vmatpush2.msra.mxu0 0.0
  %2057 = vmatprep.subr.mxu0 0.0
  %2058 = vmatpush2.msra.mxu0 0.0
  %2059 = vmatprep.subr.mxu0 0.0
  %2060 = vmatpush2.msra.mxu0 0.0
  %2061 = vmatprep.subr.mxu0 0.0
  %2062 = vmatpush2.msra.mxu0 0.0
  %2063 = vmatprep.subr.mxu0 0.0
  %2064 = vmatpush2.msra.mxu0 0.0
  %2065 = vmatprep.mubr.f32.mxu0 0.0
  %v2066 = vand.u32 %v1621, 4294901760
  %2067 = vmatmul.mubr.f32.gmra.mxu0 %v2066
  %v2068 = vpop.f32.mrf.mxu0
  %v2069 = vadd.f32 %v1997, %v2068
  %v2070 = vpop.f32.mrf.mxu0
  %2071 = vdwg.mxu0
  %v2072 = vadd.f32 %v25, %v2069
  %2073 = vst.msk [vmem:[%s6] sm:$0xff] %vm27, %v2072
  %v2074 = vsel %vm487, %v1617, 0.0
  %2075 = vadd.xlane.f32.xlu0 %v2074
  %v2076 = vpop.xlane.xlu0 %2075
  %vm2077 = vcmask 7168
  %2078 = vst.msk [vmem:[%s7] sm:$0xff] %vm2077, %v2076
  // Predicated region
  $region26: #{causal_nsf_forward.1} parent=0 // pred_check
    _
  $region27: #{causal_nsf_forward.1} parent=0 // pred_check_branch
    %2080 = sbr.rel (0) target = $region29
  $region28: #{causal_nsf_forward.1} parent=0 // pred_region
    _
  $region29: #{causal_nsf_forward.1} parent=0 // pred_fallthru
    _
  // Predicated region
  $region30: #{causal_nsf_forward.1} parent=0 // pred_check
    _
  $region31: #{causal_nsf_forward.1} parent=0 // pred_check_branch
    %2082 = sbr.rel (0) target = $region33
  $region32: #{causal_nsf_forward.1} parent=0 // pred_region
    _
  $region33: #{causal_nsf_forward.1} parent=0 // pred_fallthru
    _
  // Predicated region
  $region34: #{causal_nsf_forward.1} parent=0 // pred_check
    _
  $region35: #{causal_nsf_forward.1} parent=0 // pred_check_branch
    %2084 = sbr.rel (0) target = $region37
  $region36: #{causal_nsf_forward.1} parent=0 // pred_region
    _
  $region37: #{causal_nsf_forward.1} parent=0 // pred_fallthru
    _
  // Predicated region
  $region38: #{causal_nsf_forward.1} parent=0 // pred_check
    _
  $region39: #{causal_nsf_forward.1} parent=0 // pred_check_branch
    %2086 = sbr.rel (0) target = $region41
  $region40: #{causal_nsf_forward.1} parent=0 // pred_region
    _
  $region41: #{causal_nsf_forward.1} parent=0 // pred_fallthru
    _

</llo_original>
